<compile_context>
chip_gen: v7x
topology: tpu7x:2x2x1
jax: 0.10.0
libtpu: 0.0.40
codegen_flags: <defaults>
</compile_context>

<pallas_src>
import numpy as np

import jax
import jax.numpy as jnp
from jax.experimental import pallas as pl
from jax.experimental.pallas import tpu as pltpu


# ---------------------------------------------------------------------------
# Fused forward kernel: one grid step == one sample.
# ---------------------------------------------------------------------------
def _lenet_kernel(x_ref, w1b_ref, b1b_ref, sr1_ref, sc1_ref,
                  w2b_ref, b2b_ref, sr2_ref, sc2_ref,
                  w1p_ref, b1r_ref, w2f_ref, b2r_ref, w3f_ref, b3r_ref,
                  o_ref):
    f32 = jnp.float32
    bf16 = jnp.bfloat16

    x = x_ref[0]                                                     # (32, 32) f32

    # conv1 (1->6, k=5, VALID) + bias + ReLU as ONE banded matmul.
    # LHS lanes = (row-tap di, x); output lanes = cout*28 + x'.
    lhs1 = jnp.concatenate([x[di:di + 28, :] for di in range(5)], axis=1)        # (28,160)
    c1 = jnp.dot(lhs1.astype(bf16), w1b_ref[...], preferred_element_type=f32)    # (28,168)
    c1 = jnp.maximum(c1 + b1b_ref[...], 0.0)

    # 2x2 max-pool: pairwise maxima (VPU) + exact one-hot selection matmuls.
    mh1 = jnp.maximum(c1[:, :-1], c1[:, 1:])                         # (28,167)
    mv1 = jnp.maximum(mh1[:-1, :], mh1[1:, :])                       # (27,167)
    p1 = jnp.dot(sr1_ref[...], mv1, preferred_element_type=f32)      # (14,167)
    p1 = jnp.dot(p1, sc1_ref[...], preferred_element_type=f32)       # (14, 84) lanes=(cin,x)

    # conv2 (6->16, k=5, VALID) + bias + ReLU as ONE banded matmul.
    lhs2 = jnp.concatenate([p1[di:di + 10, :] for di in range(5)], axis=1)       # (10,420)
    c2 = jnp.dot(lhs2.astype(bf16), w2b_ref[...], preferred_element_type=f32)    # (10,160)
    c2 = jnp.maximum(c2 + b2b_ref[...], 0.0)

    # 2x2 max-pool.
    mh2 = jnp.maximum(c2[:, :-1], c2[:, 1:])                         # (10,159)
    mv2 = jnp.maximum(mh2[:-1, :], mh2[1:, :])                       # (9, 159)
    p2 = jnp.dot(sr2_ref[...], mv2, preferred_element_type=f32)      # (5, 159)
    p2 = jnp.dot(p2, sc2_ref[...], preferred_element_type=f32)       # (5, 80) lanes=(cout,x)

    # Flatten (rows concatenated along lanes) + fc1/fc2/fc3 head (bf16 MXU, f32 acc).
    v = jnp.concatenate([p2[r:r + 1, :] for r in range(5)], axis=1)  # (1, 400)
    h = jnp.dot(v.astype(bf16), w1p_ref[...], preferred_element_type=f32)
    h = jnp.maximum(h + b1r_ref[...], 0.0)                           # (1, 120)
    h = jnp.dot(h.astype(bf16), w2f_ref[...], preferred_element_type=f32)
    h = jnp.maximum(h + b2r_ref[...], 0.0)                           # (1, 84)
    o = jnp.dot(h.astype(bf16), w3f_ref[...], preferred_element_type=f32)
    o_ref[0] = (o + b3r_ref[...]).astype(o_ref.dtype)                # (1, 10)


# ---------------------------------------------------------------------------
# pallas_call wrapper
# ---------------------------------------------------------------------------
_KP_ORDER = ("w1b", "b1b", "sr1", "sc1", "w2b", "b2b", "sr2", "sc2",
             "w1p", "b1r", "w2f", "b2r", "w3f", "b3r")


def _fused_forward(x3, kp):
    n = x3.shape[0]
    consts = tuple(kp[k] for k in _KP_ORDER)

    def const_spec(a):
        return pl.BlockSpec(a.shape, lambda i, _nd=a.ndim: (0,) * _nd)

    flops = int(n * 1.2e6)
    bytes_accessed = int(
        n * (32 * 32 + 10) * 4
        + sum(int(np.prod(a.shape)) * a.dtype.itemsize for a in consts))

    out = pl.pallas_call(
        _lenet_kernel,
        out_shape=jax.ShapeDtypeStruct((n, 1, 10), jnp.float32),
        grid=(n,),
        in_specs=[pl.BlockSpec((1, 32, 32), lambda i: (i, 0, 0))]
                 + [const_spec(a) for a in consts],
        out_specs=pl.BlockSpec((1, 1, 10), lambda i: (i, 0, 0)),
        compiler_params=pltpu.CompilerParams(
            dimension_semantics=("parallel",),
            vmem_limit_bytes=32 * 1024 * 1024),
        cost_estimate=pl.CostEstimate(flops=flops, transcendentals=0,
                                      bytes_accessed=bytes_accessed),
    )(x3, *consts)
    return out.reshape(n, 10)


@jax.jit
def dnn_v2_forward(x, kparams):
    # x: (N, 1, 32, 32) NCHW, Cin == 1.
    n = x.shape[0]
    return _fused_forward(x.reshape(n, 32, 32), kparams)


# ---------------------------------------------------------------------------
# Host-side (one-time) parameter preparation: banded conv matrices,
# pooling selection matrices, fc1 row permutation, bf16 weight casts.
# ---------------------------------------------------------------------------
def prepare_params(params):
    c1w, c1b, c2w, c2b, f1w, f1b, f2w, f2b, f3w, f3b = [np.asarray(p) for p in params]
    f32 = np.float32

    # conv1 as banded matmul: rows = (di, x) of the concatenated row-taps,
    # cols = (cout, x'); value = w1[cout, 0, di, x-x'] on the 5-wide band.
    w1b = np.zeros((5 * 32, 6 * 28), f32)
    xs = np.arange(28)
    for di in range(5):
        for dj in range(5):
            for co in range(6):
                w1b[di * 32 + xs + dj, co * 28 + xs] = c1w[co, 0, di, dj]
    b1b = np.repeat(c1b, 28)[None, :]                                # (1, 168)

    # conv2 as banded matmul: rows = (di, cin, x), cols = (cout, x').
    w2b = np.zeros((5 * 84, 16 * 10), f32)
    xs = np.arange(10)
    for di in range(5):
        for ci in range(6):
            for dj in range(5):
                for co in range(16):
                    w2b[di * 84 + ci * 14 + xs + dj, co * 10 + xs] = c2w[co, ci, di, dj]
    b2b = np.repeat(c2b, 10)[None, :]                                # (1, 160)

    # Exact 0/1 down-selection matrices for the two 2x2 max-pools.
    sr1 = np.zeros((14, 27), f32); sr1[np.arange(14), 2 * np.arange(14)] = 1.0
    sc1 = np.zeros((167, 84), f32)
    for co in range(6):
        sc1[co * 28 + 2 * np.arange(14), co * 14 + np.arange(14)] = 1.0
    sr2 = np.zeros((5, 9), f32); sr2[np.arange(5), 2 * np.arange(5)] = 1.0
    sc2 = np.zeros((159, 80), f32)
    for co in range(16):
        sc2[co * 10 + 2 * np.arange(5), co * 5 + np.arange(5)] = 1.0

    # fc1 rows permuted from torch's (c, h, w) flatten order to the kernel's
    # (h, c, w) order (row r of the pooled (5, 80) map concatenated on lanes).
    idx = np.arange(400)
    r, co_, xq = idx // 80, (idx % 80) // 5, idx % 5
    w1p = f1w[co_ * 25 + r * 5 + xq, :]                              # (400, 120)

    jb = lambda a: jnp.asarray(a, dtype=jnp.bfloat16)
    jf = lambda a: jnp.asarray(a, dtype=jnp.float32)
    return dict(
        w1b=jb(w1b), b1b=jf(b1b), sr1=jf(sr1), sc1=jf(sc1),
        w2b=jb(w2b), b2b=jf(b2b), sr2=jf(sr2), sc2=jf(sc2),
        w1p=jb(w1p), b1r=jf(f1b[None, :]),
        w2f=jb(f2w), b2r=jf(f2b[None, :]),
        w3f=jb(f3w), b3r=jf(f3b[None, :]),
    )


# ---------------------------------------------------------------------------
# Torch-layout parameter init + pure-XLA reference (for the correctness check)
# ---------------------------------------------------------------------------
def init_params(key):
    ks = jax.random.split(key, 10)

    def u(k, shape, fan_in):
        bound = 1.0 / jnp.sqrt(jnp.float32(fan_in))
        return jax.random.uniform(k, shape, jnp.float32, -bound, bound)

    c1w = u(ks[0], (6, 1, 5, 5), 25)
    c1b = u(ks[1], (6,), 25)
    c2w = u(ks[2], (16, 6, 5, 5), 150)
    c2b = u(ks[3], (16,), 150)
    f1w = u(ks[4], (400, 120), 400)   # stored (in, out), rows in torch (c,h,w) order
    f1b = u(ks[5], (120,), 400)
    f2w = u(ks[6], (120, 84), 120)
    f2b = u(ks[7], (84,), 120)
    f3w = u(ks[8], (84, 10), 84)
    f3b = u(ks[9], (10,), 84)
    return (c1w, c1b, c2w, c2b, f1w, f1b, f2w, f2b, f3w, f3b)


def ref_forward(x, params):
    c1w, c1b, c2w, c2b, f1w, f1b, f2w, f2b, f3w, f3b = params

    def conv(y, w, b):
        out = jax.lax.conv_general_dilated(
            y, w, (1, 1), "VALID", dimension_numbers=("NCHW", "OIHW", "NCHW"))
        return jnp.maximum(out + b.reshape(1, -1, 1, 1), 0.0)

    def pool(y):
        return jax.lax.reduce_window(
            y, -jnp.inf, jax.lax.max, (1, 1, 2, 2), (1, 1, 2, 2), "VALID")

    y = pool(conv(x, c1w, c1b))
    y = pool(conv(y, c2w, c2b))
    y = y.reshape(y.shape[0], -1)
    y = jnp.maximum(y @ f1w + f1b, 0.0)
    y = jnp.maximum(y @ f2w + f2b, 0.0)
    return y @ f3w + f3b


if __name__ == "__main__":
    x = jax.random.normal(jax.random.PRNGKey(0), (2, 1, 32, 32), jnp.float32)
    params = init_params(jax.random.PRNGKey(42))
    kparams = prepare_params(params)

    out = jax.block_until_ready(dnn_v2_forward(x, kparams))
    assert out.shape == (2, 10), out.shape

    ref = ref_forward(x, params)
    # bf16 MXU operands (f32 accumulation) -> loosened tolerance vs f32 reference.
    if not jnp.allclose(out, ref, atol=3e-2, rtol=3e-2):
        err = float(jnp.max(jnp.abs(out - ref)))
        raise AssertionError(f"Pallas output does not match JAX reference (max abs diff {err:.4f})")
    print("KERNEL_OK")
</pallas_src>

<mosaic_0001>
module attributes {stable_mosaic.version = 11 : i64} {
  func.func @_lenet_kernel(%arg0: i32, %arg1: memref<1x32x32xf32, #tpu.memory_space<vmem>>, %arg2: memref<160x168xbf16, #tpu.memory_space<vmem>>, %arg3: memref<1x168xf32, #tpu.memory_space<vmem>>, %arg4: memref<14x27xf32, #tpu.memory_space<vmem>>, %arg5: memref<167x84xf32, #tpu.memory_space<vmem>>, %arg6: memref<420x160xbf16, #tpu.memory_space<vmem>>, %arg7: memref<1x160xf32, #tpu.memory_space<vmem>>, %arg8: memref<5x9xf32, #tpu.memory_space<vmem>>, %arg9: memref<159x80xf32, #tpu.memory_space<vmem>>, %arg10: memref<400x120xbf16, #tpu.memory_space<vmem>>, %arg11: memref<1x120xf32, #tpu.memory_space<vmem>>, %arg12: memref<120x84xbf16, #tpu.memory_space<vmem>>, %arg13: memref<1x84xf32, #tpu.memory_space<vmem>>, %arg14: memref<84x10xbf16, #tpu.memory_space<vmem>>, %arg15: memref<1x10xf32, #tpu.memory_space<vmem>>, %arg16: memref<1x1x10xf32, #tpu.memory_space<vmem>>) attributes {dimension_semantics = [#tpu.dimension_semantics<parallel>], iteration_bounds = array<i64: 2>, scalar_prefetch = 0 : i64, scratch_operands = 0 : i64, tpu.core_type = #tpu.core_type<tc>, window_params = [{transform_indices = @transform_0, window_bounds = array<i64: 1, 32, 32>}, {pipeline_mode = #tpu.pipeline_mode<synchronous>, transform_indices = @transform_1, window_bounds = array<i64: 160, 168>}, {pipeline_mode = #tpu.pipeline_mode<synchronous>, transform_indices = @transform_2, window_bounds = array<i64: 1, 168>}, {pipeline_mode = #tpu.pipeline_mode<synchronous>, transform_indices = @transform_3, window_bounds = array<i64: 14, 27>}, {pipeline_mode = #tpu.pipeline_mode<synchronous>, transform_indices = @transform_4, window_bounds = array<i64: 167, 84>}, {pipeline_mode = #tpu.pipeline_mode<synchronous>, transform_indices = @transform_5, window_bounds = array<i64: 420, 160>}, {pipeline_mode = #tpu.pipeline_mode<synchronous>, transform_indices = @transform_6, window_bounds = array<i64: 1, 160>}, {pipeline_mode = #tpu.pipeline_mode<synchronous>, transform_indices = @transform_7, window_bounds = array<i64: 5, 9>}, {pipeline_mode = #tpu.pipeline_mode<synchronous>, transform_indices = @transform_8, window_bounds = array<i64: 159, 80>}, {pipeline_mode = #tpu.pipeline_mode<synchronous>, transform_indices = @transform_9, window_bounds = array<i64: 400, 120>}, {pipeline_mode = #tpu.pipeline_mode<synchronous>, transform_indices = @transform_10, window_bounds = array<i64: 1, 120>}, {pipeline_mode = #tpu.pipeline_mode<synchronous>, transform_indices = @transform_11, window_bounds = array<i64: 120, 84>}, {pipeline_mode = #tpu.pipeline_mode<synchronous>, transform_indices = @transform_12, window_bounds = array<i64: 1, 84>}, {pipeline_mode = #tpu.pipeline_mode<synchronous>, transform_indices = @transform_13, window_bounds = array<i64: 84, 10>}, {pipeline_mode = #tpu.pipeline_mode<synchronous>, transform_indices = @transform_14, window_bounds = array<i64: 1, 10>}, {transform_indices = @transform_15, window_bounds = array<i64: 1, 1, 10>}]} {
    %c0 = arith.constant 0 : index
    %c0_0 = arith.constant 0 : index
    %c0_1 = arith.constant 0 : index
    %0 = vector.load %arg1[%c0, %c0_0, %c0_1] : memref<1x32x32xf32, #tpu.memory_space<vmem>>, vector<1x32x32xf32>
    %1 = vector.shape_cast %0 : vector<1x32x32xf32> to vector<32x32xf32>
    %2 = vector.extract_strided_slice %1 {offsets = [0, 0], sizes = [28, 32], strides = [1, 1]} : vector<32x32xf32> to vector<28x32xf32>
    %3 = vector.extract_strided_slice %1 {offsets = [1, 0], sizes = [28, 32], strides = [1, 1]} : vector<32x32xf32> to vector<28x32xf32>
    %4 = vector.extract_strided_slice %1 {offsets = [2, 0], sizes = [28, 32], strides = [1, 1]} : vector<32x32xf32> to vector<28x32xf32>
    %5 = vector.extract_strided_slice %1 {offsets = [3, 0], sizes = [28, 32], strides = [1, 1]} : vector<32x32xf32> to vector<28x32xf32>
    %6 = vector.extract_strided_slice %1 {offsets = [4, 0], sizes = [28, 32], strides = [1, 1]} : vector<32x32xf32> to vector<28x32xf32>
    %7 = tpu.concatenate %2, %3, %4, %5, %6 in 1 : vector<28x32xf32>, vector<28x32xf32>, vector<28x32xf32>, vector<28x32xf32>, vector<28x32xf32> -> vector<28x160xf32>
    %8 = arith.truncf %7 : vector<28x160xf32> to vector<28x160xbf16>
    %c0_2 = arith.constant 0 : index
    %c0_3 = arith.constant 0 : index
    %9 = vector.load %arg2[%c0_2, %c0_3] : memref<160x168xbf16, #tpu.memory_space<vmem>>, vector<160x168xbf16>
    %cst = arith.constant dense<0.000000e+00> : vector<28x168xf32>
    %10 = tpu.matmul %8, %9, %cst {dimension_numbers = #tpu.dot_dimension_numbers<[1], [0], [0], [1], [0, 0, 1, 1], [], []>} : vector<28x160xbf16>, vector<160x168xbf16>, vector<28x168xf32> -> vector<28x168xf32>
    %c0_4 = arith.constant 0 : index
    %c0_5 = arith.constant 0 : index
    %11 = vector.load %arg3[%c0_4, %c0_5] : memref<1x168xf32, #tpu.memory_space<vmem>>, vector<1x168xf32>
    %12 = vector.broadcast %11 : vector<1x168xf32> to vector<28x168xf32>
    %13 = arith.addf %10, %12 : vector<28x168xf32>
    %cst_6 = arith.constant 0.000000e+00 : f32
    %14 = vector.broadcast %cst_6 : f32 to vector<28x168xf32>
    %15 = arith.maximumf %13, %14 : vector<28x168xf32>
    %16 = vector.extract_strided_slice %15 {offsets = [0, 0], sizes = [28, 167], strides = [1, 1]} : vector<28x168xf32> to vector<28x167xf32>
    %17 = vector.extract_strided_slice %15 {offsets = [0, 1], sizes = [28, 167], strides = [1, 1]} : vector<28x168xf32> to vector<28x167xf32>
    %18 = arith.maximumf %16, %17 : vector<28x167xf32>
    %19 = vector.extract_strided_slice %18 {offsets = [0, 0], sizes = [27, 167], strides = [1, 1]} : vector<28x167xf32> to vector<27x167xf32>
    %20 = vector.extract_strided_slice %18 {offsets = [1, 0], sizes = [27, 167], strides = [1, 1]} : vector<28x167xf32> to vector<27x167xf32>
    %21 = arith.maximumf %19, %20 : vector<27x167xf32>
    %c0_7 = arith.constant 0 : index
    %c0_8 = arith.constant 0 : index
    %22 = vector.load %arg4[%c0_7, %c0_8] : memref<14x27xf32, #tpu.memory_space<vmem>>, vector<14x27xf32>
    %cst_9 = arith.constant dense<0.000000e+00> : vector<14x167xf32>
    %23 = tpu.matmul %22, %21, %cst_9 {dimension_numbers = #tpu.dot_dimension_numbers<[1], [0], [0], [1], [0, 0, 1, 1], [], []>} : vector<14x27xf32>, vector<27x167xf32>, vector<14x167xf32> -> vector<14x167xf32>
    %c0_10 = arith.constant 0 : index
    %c0_11 = arith.constant 0 : index
    %24 = vector.load %arg5[%c0_10, %c0_11] : memref<167x84xf32, #tpu.memory_space<vmem>>, vector<167x84xf32>
    %cst_12 = arith.constant dense<0.000000e+00> : vector<14x84xf32>
    %25 = tpu.matmul %23, %24, %cst_12 {dimension_numbers = #tpu.dot_dimension_numbers<[1], [0], [0], [1], [0, 0, 1, 1], [], []>} : vector<14x167xf32>, vector<167x84xf32>, vector<14x84xf32> -> vector<14x84xf32>
    %26 = vector.extract_strided_slice %25 {offsets = [0, 0], sizes = [10, 84], strides = [1, 1]} : vector<14x84xf32> to vector<10x84xf32>
    %27 = vector.extract_strided_slice %25 {offsets = [1, 0], sizes = [10, 84], strides = [1, 1]} : vector<14x84xf32> to vector<10x84xf32>
    %28 = vector.extract_strided_slice %25 {offsets = [2, 0], sizes = [10, 84], strides = [1, 1]} : vector<14x84xf32> to vector<10x84xf32>
    %29 = vector.extract_strided_slice %25 {offsets = [3, 0], sizes = [10, 84], strides = [1, 1]} : vector<14x84xf32> to vector<10x84xf32>
    %30 = vector.extract_strided_slice %25 {offsets = [4, 0], sizes = [10, 84], strides = [1, 1]} : vector<14x84xf32> to vector<10x84xf32>
    %31 = tpu.concatenate %26, %27, %28, %29, %30 in 1 : vector<10x84xf32>, vector<10x84xf32>, vector<10x84xf32>, vector<10x84xf32>, vector<10x84xf32> -> vector<10x420xf32>
    %32 = arith.truncf %31 : vector<10x420xf32> to vector<10x420xbf16>
    %c0_13 = arith.constant 0 : index
    %c0_14 = arith.constant 0 : index
    %33 = vector.load %arg6[%c0_13, %c0_14] : memref<420x160xbf16, #tpu.memory_space<vmem>>, vector<420x160xbf16>
    %cst_15 = arith.constant dense<0.000000e+00> : vector<10x160xf32>
    %34 = tpu.matmul %32, %33, %cst_15 {dimension_numbers = #tpu.dot_dimension_numbers<[1], [0], [0], [1], [0, 0, 1, 1], [], []>} : vector<10x420xbf16>, vector<420x160xbf16>, vector<10x160xf32> -> vector<10x160xf32>
    %c0_16 = arith.constant 0 : index
    %c0_17 = arith.constant 0 : index
    %35 = vector.load %arg7[%c0_16, %c0_17] : memref<1x160xf32, #tpu.memory_space<vmem>>, vector<1x160xf32>
    %36 = vector.broadcast %35 : vector<1x160xf32> to vector<10x160xf32>
    %37 = arith.addf %34, %36 : vector<10x160xf32>
    %cst_18 = arith.constant 0.000000e+00 : f32
    %38 = vector.broadcast %cst_18 : f32 to vector<10x160xf32>
    %39 = arith.maximumf %37, %38 : vector<10x160xf32>
    %40 = vector.extract_strided_slice %39 {offsets = [0, 0], sizes = [10, 159], strides = [1, 1]} : vector<10x160xf32> to vector<10x159xf32>
    %41 = vector.extract_strided_slice %39 {offsets = [0, 1], sizes = [10, 159], strides = [1, 1]} : vector<10x160xf32> to vector<10x159xf32>
    %42 = arith.maximumf %40, %41 : vector<10x159xf32>
    %43 = vector.extract_strided_slice %42 {offsets = [0, 0], sizes = [9, 159], strides = [1, 1]} : vector<10x159xf32> to vector<9x159xf32>
    %44 = vector.extract_strided_slice %42 {offsets = [1, 0], sizes = [9, 159], strides = [1, 1]} : vector<10x159xf32> to vector<9x159xf32>
    %45 = arith.maximumf %43, %44 : vector<9x159xf32>
    %c0_19 = arith.constant 0 : index
    %c0_20 = arith.constant 0 : index
    %46 = vector.load %arg8[%c0_19, %c0_20] : memref<5x9xf32, #tpu.memory_space<vmem>>, vector<5x9xf32>
    %cst_21 = arith.constant dense<0.000000e+00> : vector<5x159xf32>
    %47 = tpu.matmul %46, %45, %cst_21 {dimension_numbers = #tpu.dot_dimension_numbers<[1], [0], [0], [1], [0, 0, 1, 1], [], []>} : vector<5x9xf32>, vector<9x159xf32>, vector<5x159xf32> -> vector<5x159xf32>
    %c0_22 = arith.constant 0 : index
    %c0_23 = arith.constant 0 : index
    %48 = vector.load %arg9[%c0_22, %c0_23] : memref<159x80xf32, #tpu.memory_space<vmem>>, vector<159x80xf32>
    %cst_24 = arith.constant dense<0.000000e+00> : vector<5x80xf32>
    %49 = tpu.matmul %47, %48, %cst_24 {dimension_numbers = #tpu.dot_dimension_numbers<[1], [0], [0], [1], [0, 0, 1, 1], [], []>} : vector<5x159xf32>, vector<159x80xf32>, vector<5x80xf32> -> vector<5x80xf32>
    %50 = vector.extract_strided_slice %49 {offsets = [0, 0], sizes = [1, 80], strides = [1, 1]} : vector<5x80xf32> to vector<1x80xf32>
    %51 = vector.extract_strided_slice %49 {offsets = [1, 0], sizes = [1, 80], strides = [1, 1]} : vector<5x80xf32> to vector<1x80xf32>
    %52 = vector.extract_strided_slice %49 {offsets = [2, 0], sizes = [1, 80], strides = [1, 1]} : vector<5x80xf32> to vector<1x80xf32>
    %53 = vector.extract_strided_slice %49 {offsets = [3, 0], sizes = [1, 80], strides = [1, 1]} : vector<5x80xf32> to vector<1x80xf32>
    %54 = vector.extract_strided_slice %49 {offsets = [4, 0], sizes = [1, 80], strides = [1, 1]} : vector<5x80xf32> to vector<1x80xf32>
    %55 = tpu.concatenate %50, %51, %52, %53, %54 in 1 : vector<1x80xf32>, vector<1x80xf32>, vector<1x80xf32>, vector<1x80xf32>, vector<1x80xf32> -> vector<1x400xf32>
    %56 = arith.truncf %55 : vector<1x400xf32> to vector<1x400xbf16>
    %c0_25 = arith.constant 0 : index
    %c0_26 = arith.constant 0 : index
    %57 = vector.load %arg10[%c0_25, %c0_26] : memref<400x120xbf16, #tpu.memory_space<vmem>>, vector<400x120xbf16>
    %cst_27 = arith.constant dense<0.000000e+00> : vector<1x120xf32>
    %58 = tpu.matmul %56, %57, %cst_27 {dimension_numbers = #tpu.dot_dimension_numbers<[1], [0], [0], [1], [0, 0, 1, 1], [], []>} : vector<1x400xbf16>, vector<400x120xbf16>, vector<1x120xf32> -> vector<1x120xf32>
    %c0_28 = arith.constant 0 : index
    %c0_29 = arith.constant 0 : index
    %59 = vector.load %arg11[%c0_28, %c0_29] : memref<1x120xf32, #tpu.memory_space<vmem>>, vector<1x120xf32>
    %60 = arith.addf %58, %59 : vector<1x120xf32>
    %cst_30 = arith.constant 0.000000e+00 : f32
    %61 = vector.broadcast %cst_30 : f32 to vector<1x120xf32>
    %62 = arith.maximumf %60, %61 : vector<1x120xf32>
    %63 = arith.truncf %62 : vector<1x120xf32> to vector<1x120xbf16>
    %c0_31 = arith.constant 0 : index
    %c0_32 = arith.constant 0 : index
    %64 = vector.load %arg12[%c0_31, %c0_32] : memref<120x84xbf16, #tpu.memory_space<vmem>>, vector<120x84xbf16>
    %cst_33 = arith.constant dense<0.000000e+00> : vector<1x84xf32>
    %65 = tpu.matmul %63, %64, %cst_33 {dimension_numbers = #tpu.dot_dimension_numbers<[1], [0], [0], [1], [0, 0, 1, 1], [], []>} : vector<1x120xbf16>, vector<120x84xbf16>, vector<1x84xf32> -> vector<1x84xf32>
    %c0_34 = arith.constant 0 : index
    %c0_35 = arith.constant 0 : index
    %66 = vector.load %arg13[%c0_34, %c0_35] : memref<1x84xf32, #tpu.memory_space<vmem>>, vector<1x84xf32>
    %67 = arith.addf %65, %66 : vector<1x84xf32>
    %cst_36 = arith.constant 0.000000e+00 : f32
    %68 = vector.broadcast %cst_36 : f32 to vector<1x84xf32>
    %69 = arith.maximumf %67, %68 : vector<1x84xf32>
    %70 = arith.truncf %69 : vector<1x84xf32> to vector<1x84xbf16>
    %c0_37 = arith.constant 0 : index
    %c0_38 = arith.constant 0 : index
    %71 = vector.load %arg14[%c0_37, %c0_38] : memref<84x10xbf16, #tpu.memory_space<vmem>>, vector<84x10xbf16>
    %cst_39 = arith.constant dense<0.000000e+00> : vector<1x10xf32>
    %72 = tpu.matmul %70, %71, %cst_39 {dimension_numbers = #tpu.dot_dimension_numbers<[1], [0], [0], [1], [0, 0, 1, 1], [], []>} : vector<1x84xbf16>, vector<84x10xbf16>, vector<1x10xf32> -> vector<1x10xf32>
    %c0_40 = arith.constant 0 : index
    %c0_41 = arith.constant 0 : index
    %73 = vector.load %arg15[%c0_40, %c0_41] : memref<1x10xf32, #tpu.memory_space<vmem>>, vector<1x10xf32>
    %74 = arith.addf %72, %73 : vector<1x10xf32>
    %c0_42 = arith.constant 0 : index
    %c0_43 = arith.constant 0 : index
    %c0_44 = arith.constant 0 : index
    %75 = vector.load %arg16[%c0_42, %c0_43, %c0_44] : memref<1x1x10xf32, #tpu.memory_space<vmem>>, vector<1x1x10xf32>
    %76 = vector.shape_cast %75 : vector<1x1x10xf32> to vector<1x10xf32>
    %77 = vector.shape_cast %74 : vector<1x10xf32> to vector<1x1x10xf32>
    tpu.vector_store %arg16[%c0_42, %c0_43, %c0_44], %77 {strides = array<i32>} : memref<1x1x10xf32, #tpu.memory_space<vmem>>, vector<1x1x10xf32>,
    return
  }
  func.func @transform_0(%arg0: i32) -> (i32, i32, i32) {
    %c0_i32 = arith.constant 0 : i32
    %c0_i32_0 = arith.constant 0 : i32
    %c0_i32_1 = arith.constant 0 : i32
    return %arg0, %c0_i32, %c0_i32_0 : i32, i32, i32
  }
  func.func @transform_1(%arg0: i32) -> (i32, i32) {
    %c0_i32 = arith.constant 0 : i32
    %c0_i32_0 = arith.constant 0 : i32
    %c0_i32_1 = arith.constant 0 : i32
    return %c0_i32, %c0_i32_0 : i32, i32
  }
  func.func @transform_2(%arg0: i32) -> (i32, i32) {
    %c0_i32 = arith.constant 0 : i32
    %c0_i32_0 = arith.constant 0 : i32
    %c0_i32_1 = arith.constant 0 : i32
    return %c0_i32, %c0_i32_0 : i32, i32
  }
  func.func @transform_3(%arg0: i32) -> (i32, i32) {
    %c0_i32 = arith.constant 0 : i32
    %c0_i32_0 = arith.constant 0 : i32
    %c0_i32_1 = arith.constant 0 : i32
    return %c0_i32, %c0_i32_0 : i32, i32
  }
  func.func @transform_4(%arg0: i32) -> (i32, i32) {
    %c0_i32 = arith.constant 0 : i32
    %c0_i32_0 = arith.constant 0 : i32
    %c0_i32_1 = arith.constant 0 : i32
    return %c0_i32, %c0_i32_0 : i32, i32
  }
  func.func @transform_5(%arg0: i32) -> (i32, i32) {
    %c0_i32 = arith.constant 0 : i32
    %c0_i32_0 = arith.constant 0 : i32
    %c0_i32_1 = arith.constant 0 : i32
    return %c0_i32, %c0_i32_0 : i32, i32
  }
  func.func @transform_6(%arg0: i32) -> (i32, i32) {
    %c0_i32 = arith.constant 0 : i32
    %c0_i32_0 = arith.constant 0 : i32
    %c0_i32_1 = arith.constant 0 : i32
    return %c0_i32, %c0_i32_0 : i32, i32
  }
  func.func @transform_7(%arg0: i32) -> (i32, i32) {
    %c0_i32 = arith.constant 0 : i32
    %c0_i32_0 = arith.constant 0 : i32
    %c0_i32_1 = arith.constant 0 : i32
    return %c0_i32, %c0_i32_0 : i32, i32
  }
  func.func @transform_8(%arg0: i32) -> (i32, i32) {
    %c0_i32 = arith.constant 0 : i32
    %c0_i32_0 = arith.constant 0 : i32
    %c0_i32_1 = arith.constant 0 : i32
    return %c0_i32, %c0_i32_0 : i32, i32
  }
  func.func @transform_9(%arg0: i32) -> (i32, i32) {
    %c0_i32 = arith.constant 0 : i32
    %c0_i32_0 = arith.constant 0 : i32
    %c0_i32_1 = arith.constant 0 : i32
    return %c0_i32, %c0_i32_0 : i32, i32
  }
  func.func @transform_10(%arg0: i32) -> (i32, i32) {
    %c0_i32 = arith.constant 0 : i32
    %c0_i32_0 = arith.constant 0 : i32
    %c0_i32_1 = arith.constant 0 : i32
    return %c0_i32, %c0_i32_0 : i32, i32
  }
  func.func @transform_11(%arg0: i32) -> (i32, i32) {
    %c0_i32 = arith.constant 0 : i32
    %c0_i32_0 = arith.constant 0 : i32
    %c0_i32_1 = arith.constant 0 : i32
    return %c0_i32, %c0_i32_0 : i32, i32
  }
  func.func @transform_12(%arg0: i32) -> (i32, i32) {
    %c0_i32 = arith.constant 0 : i32
    %c0_i32_0 = arith.constant 0 : i32
    %c0_i32_1 = arith.constant 0 : i32
    return %c0_i32, %c0_i32_0 : i32, i32
  }
  func.func @transform_13(%arg0: i32) -> (i32, i32) {
    %c0_i32 = arith.constant 0 : i32
    %c0_i32_0 = arith.constant 0 : i32
    %c0_i32_1 = arith.constant 0 : i32
    return %c0_i32, %c0_i32_0 : i32, i32
  }
  func.func @transform_14(%arg0: i32) -> (i32, i32) {
    %c0_i32 = arith.constant 0 : i32
    %c0_i32_0 = arith.constant 0 : i32
    %c0_i32_1 = arith.constant 0 : i32
    return %c0_i32, %c0_i32_0 : i32, i32
  }
  func.func @transform_15(%arg0: i32) -> (i32, i32, i32) {
    %c0_i32 = arith.constant 0 : i32
    %c0_i32_0 = arith.constant 0 : i32
    %c0_i32_1 = arith.constant 0 : i32
    return %arg0, %c0_i32, %c0_i32_0 : i32, i32, i32
  }
}

</mosaic_0001>

<llo_original>
// kernel: dnn_v2_forward.1
$region0: #{dnn_v2_forward.1}
  #allocation0 [shape = 'u32[]', space=smem, size = 0x4, offset = 0x4, fixed_abs, tag = 'smem constant byte address 0x4 - core index']
  #allocation1 [shape = 'u32[144,128]{1,0:T(1,128)}', space=vmem, size = 0x12000, scoped, tag = 'internal scratch']
  %s0 = inlined_call_operand.vmem [shape: f32[2,32,32], index: 0, kind: input, shape index: {}]
  %s1 = inlined_call_operand.vmem [shape: bf16[160,168], index: 1, kind: input, shape index: {}]
  %s2 = inlined_call_operand.vmem [shape: f32[1,168], index: 2, kind: input, shape index: {}]
  %s3 = inlined_call_operand.vmem [shape: f32[14,27], index: 3, kind: input, shape index: {}]
  %s4 = inlined_call_operand.vmem [shape: f32[167,84], index: 4, kind: input, shape index: {}]
  %s5 = inlined_call_operand.vmem [shape: bf16[420,160], index: 5, kind: input, shape index: {}]
  %s6 = inlined_call_operand.vmem [shape: f32[1,160], index: 6, kind: input, shape index: {}]
  %s7 = inlined_call_operand.vmem [shape: f32[5,9], index: 7, kind: input, shape index: {}]
  %s8 = inlined_call_operand.vmem [shape: f32[159,80], index: 8, kind: input, shape index: {}]
  %s9 = inlined_call_operand.vmem [shape: bf16[400,120], index: 9, kind: input, shape index: {}]
  %s10 = inlined_call_operand.vmem [shape: f32[1,120], index: 10, kind: input, shape index: {}]
  %s11 = inlined_call_operand.vmem [shape: bf16[120,84], index: 11, kind: input, shape index: {}]
  %s12 = inlined_call_operand.vmem [shape: f32[1,84], index: 12, kind: input, shape index: {}]
  %s13 = inlined_call_operand.vmem [shape: bf16[84,10], index: 13, kind: input, shape index: {}]
  %s14 = inlined_call_operand.vmem [shape: f32[1,10], index: 14, kind: input, shape index: {}]
  %s15 = inlined_call_operand.hbm [shape: f32[2,1,10], index: 15, kind: output, shape index: {}]
  %s16 = sld [smem:[#allocation0]]
  $region93: #{dnn_v2_forward.1} parent=0
    _
  %s18 = ssub.s32 1, %s16
  %s19 = scalar_select 0, %s18, %s16
  $region1: #{dnn_v2_forward.1} parent=0
    #allocation2 [shape = 'u8[1024]{0}', space=vmem, size = 0x400, scoped, tag = 'output window, operand 0']
    #allocation3 [shape = 's32[2]{0}', space=sflag, size = 0x8, scoped, tag = 'scoped memory for dnn_v2_forward.1']
    %20 = vsyncpa [#allocation3], 0
    %s21 = scalar_lea.sflag [#allocation3], 1
    %22 = vsyncpa %s21, 0
    loop: start=0, step=1, limit=4
    $region2: #{dnn_v2_forward.1} parent=1 // loop_pre_header
      _
    $region3: #{dnn_v2_forward.1} parent=1 // loop_header
      %s24 = sphi 0, %s28
      %p25 = scmp.ge.s32.totalorder %s24, 4
      %s34 = sphi 0, %s36
      %s37 = sphi 0, %s34
      %s38 = sphi 0, %s37
      %s54 = sphi 0, %s38
      %s58 = sphi 0, %s58
      %s60 = sphi 0, %s58
      %s61 = sphi 0, %s60
      %s75 = sphi 0, %s61
      %s79 = sphi 0, %s79
      %s81 = sphi 0, %s79
      %s82 = sphi 0, %s81
      %s96 = sphi 0, %s82
      %s100 = sphi 0, %s100
      %s102 = sphi 0, %s100
      %s103 = sphi 0, %s102
      %s117 = sphi 0, %s103
      %s121 = sphi 0, %s121
      %s123 = sphi 0, %s121
      %s124 = sphi 0, %s123
      %s138 = sphi 0, %s124
      %s142 = sphi 0, %s142
      %s144 = sphi 0, %s142
      %s145 = sphi 0, %s144
      %s159 = sphi 0, %s145
      %s163 = sphi 0, %s163
      %s165 = sphi 0, %s163
      %s166 = sphi 0, %s165
      %s180 = sphi 0, %s166
      %s184 = sphi 0, %s184
      %s186 = sphi 0, %s184
      %s187 = sphi 0, %s186
      %s201 = sphi 0, %s187
      %s205 = sphi 0, %s205
      %s207 = sphi 0, %s205
      %s208 = sphi 0, %s207
      %s222 = sphi 0, %s208
      %s226 = sphi 0, %s226
      %s228 = sphi 0, %s226
      %s229 = sphi 0, %s228
      %s243 = sphi 0, %s229
      %s247 = sphi 0, %s247
      %s249 = sphi 0, %s247
      %s250 = sphi 0, %s249
      %s264 = sphi 0, %s250
      %s268 = sphi 0, %s268
      %s270 = sphi 0, %s268
      %s271 = sphi 0, %s270
      %s285 = sphi 0, %s271
      %s289 = sphi 0, %s289
      %s291 = sphi 0, %s289
      %s292 = sphi 0, %s291
      %s306 = sphi 0, %s292
      %s310 = sphi 0, %s310
      %s312 = sphi 0, %s310
      %s313 = sphi 0, %s312
      %s327 = sphi 0, %s313
      %s331 = sphi 0, %s331
      %s333 = sphi 0, %s331
      %s334 = sphi 0, %s333
      %s348 = sphi 0, %s334
      %s354 = sphi 0, %s356
      %s357 = sphi 0, %s354
      %s358 = sphi 0, %s357
      %s374 = sphi 0, %s358
    $region4: #{dnn_v2_forward.1} parent=1 // loop_header_branch
      %27 = sbr.rel (%p25) target = $region8
    $region5: #{dnn_v2_forward.1} parent=1 // loop_body
      %s29 = ssub.s32 %s24, 1
      %s30 = ssub.s32 %s24, 2
      %s31 = sadd.s32 %s24, 1
      %s32 = ssub.s32 %s24, %s31
      %p33 = scmp.eq.s32.totalorder %s32, 0
      %s35 = sadd.s32 %s34, 1
      %s36 = scalar_select %p33, %s34, %s35
      %p39 = pneg %p33
      %p40 = scmp.eq.s32.totalorder %s24, 1
      %p41 = por %p39, %p40
      %p42 = scmp.ne.s32.totalorder %s34, %s37
      %p43 = scmp.eq.s32.totalorder %s24, 0
      %p44 = por %p42, %p43
      %p45 = scmp.ne.s32.totalorder %s34, %s37
      %p46 = scmp.eq.s32.totalorder %s29, 1
      %p47 = por %p45, %p46
      %p48 = scmp.ne.s32.totalorder %s37, %s38
      %p49 = scmp.eq.s32.totalorder %s29, 0
      %p50 = por %p48, %p49
      %p51 = scmp.ne.s32.totalorder %s37, %s38
      %p52 = scmp.eq.s32.totalorder %s30, 1
      %p53 = por %p51, %p52
      %p55 = scmp.ne.s32.totalorder %s38, %s54
      %p56 = scmp.eq.s32.totalorder %s30, 0
      %p57 = por %p55, %p56
      %s59 = sadd.s32 %s58, 1
      %p62 = scmp.eq.s32.totalorder %s24, 1
      %p63 = scmp.ne.s32.totalorder %s58, %s60
      %p64 = scmp.eq.s32.totalorder %s24, 0
      %p65 = por %p63, %p64
      %p66 = scmp.ne.s32.totalorder %s58, %s60
      %p67 = scmp.eq.s32.totalorder %s29, 1
      %p68 = por %p66, %p67
      %p69 = scmp.ne.s32.totalorder %s60, %s61
      %p70 = scmp.eq.s32.totalorder %s29, 0
      %p71 = por %p69, %p70
      %p72 = scmp.ne.s32.totalorder %s60, %s61
      %p73 = scmp.eq.s32.totalorder %s30, 1
      %p74 = por %p72, %p73
      %p76 = scmp.ne.s32.totalorder %s61, %s75
      %p77 = scmp.eq.s32.totalorder %s30, 0
      %p78 = por %p76, %p77
      %s80 = sadd.s32 %s79, 1
      %p83 = scmp.eq.s32.totalorder %s24, 1
      %p84 = scmp.ne.s32.totalorder %s79, %s81
      %p85 = scmp.eq.s32.totalorder %s24, 0
      %p86 = por %p84, %p85
      %p87 = scmp.ne.s32.totalorder %s79, %s81
      %p88 = scmp.eq.s32.totalorder %s29, 1
      %p89 = por %p87, %p88
      %p90 = scmp.ne.s32.totalorder %s81, %s82
      %p91 = scmp.eq.s32.totalorder %s29, 0
      %p92 = por %p90, %p91
      %p93 = scmp.ne.s32.totalorder %s81, %s82
      %p94 = scmp.eq.s32.totalorder %s30, 1
      %p95 = por %p93, %p94
      %p97 = scmp.ne.s32.totalorder %s82, %s96
      %p98 = scmp.eq.s32.totalorder %s30, 0
      %p99 = por %p97, %p98
      %s101 = sadd.s32 %s100, 1
      %p104 = scmp.eq.s32.totalorder %s24, 1
      %p105 = scmp.ne.s32.totalorder %s100, %s102
      %p106 = scmp.eq.s32.totalorder %s24, 0
      %p107 = por %p105, %p106
      %p108 = scmp.ne.s32.totalorder %s100, %s102
      %p109 = scmp.eq.s32.totalorder %s29, 1
      %p110 = por %p108, %p109
      %p111 = scmp.ne.s32.totalorder %s102, %s103
      %p112 = scmp.eq.s32.totalorder %s29, 0
      %p113 = por %p111, %p112
      %p114 = scmp.ne.s32.totalorder %s102, %s103
      %p115 = scmp.eq.s32.totalorder %s30, 1
      %p116 = por %p114, %p115
      %p118 = scmp.ne.s32.totalorder %s103, %s117
      %p119 = scmp.eq.s32.totalorder %s30, 0
      %p120 = por %p118, %p119
      %s122 = sadd.s32 %s121, 1
      %p125 = scmp.eq.s32.totalorder %s24, 1
      %p126 = scmp.ne.s32.totalorder %s121, %s123
      %p127 = scmp.eq.s32.totalorder %s24, 0
      %p128 = por %p126, %p127
      %p129 = scmp.ne.s32.totalorder %s121, %s123
      %p130 = scmp.eq.s32.totalorder %s29, 1
      %p131 = por %p129, %p130
      %p132 = scmp.ne.s32.totalorder %s123, %s124
      %p133 = scmp.eq.s32.totalorder %s29, 0
      %p134 = por %p132, %p133
      %p135 = scmp.ne.s32.totalorder %s123, %s124
      %p136 = scmp.eq.s32.totalorder %s30, 1
      %p137 = por %p135, %p136
      %p139 = scmp.ne.s32.totalorder %s124, %s138
      %p140 = scmp.eq.s32.totalorder %s30, 0
      %p141 = por %p139, %p140
      %s143 = sadd.s32 %s142, 1
      %p146 = scmp.eq.s32.totalorder %s24, 1
      %p147 = scmp.ne.s32.totalorder %s142, %s144
      %p148 = scmp.eq.s32.totalorder %s24, 0
      %p149 = por %p147, %p148
      %p150 = scmp.ne.s32.totalorder %s142, %s144
      %p151 = scmp.eq.s32.totalorder %s29, 1
      %p152 = por %p150, %p151
      %p153 = scmp.ne.s32.totalorder %s144, %s145
      %p154 = scmp.eq.s32.totalorder %s29, 0
      %p155 = por %p153, %p154
      %p156 = scmp.ne.s32.totalorder %s144, %s145
      %p157 = scmp.eq.s32.totalorder %s30, 1
      %p158 = por %p156, %p157
      %p160 = scmp.ne.s32.totalorder %s145, %s159
      %p161 = scmp.eq.s32.totalorder %s30, 0
      %p162 = por %p160, %p161
      %s164 = sadd.s32 %s163, 1
      %p167 = scmp.eq.s32.totalorder %s24, 1
      %p168 = scmp.ne.s32.totalorder %s163, %s165
      %p169 = scmp.eq.s32.totalorder %s24, 0
      %p170 = por %p168, %p169
      %p171 = scmp.ne.s32.totalorder %s163, %s165
      %p172 = scmp.eq.s32.totalorder %s29, 1
      %p173 = por %p171, %p172
      %p174 = scmp.ne.s32.totalorder %s165, %s166
      %p175 = scmp.eq.s32.totalorder %s29, 0
      %p176 = por %p174, %p175
      %p177 = scmp.ne.s32.totalorder %s165, %s166
      %p178 = scmp.eq.s32.totalorder %s30, 1
      %p179 = por %p177, %p178
      %p181 = scmp.ne.s32.totalorder %s166, %s180
      %p182 = scmp.eq.s32.totalorder %s30, 0
      %p183 = por %p181, %p182
      %s185 = sadd.s32 %s184, 1
      %p188 = scmp.eq.s32.totalorder %s24, 1
      %p189 = scmp.ne.s32.totalorder %s184, %s186
      %p190 = scmp.eq.s32.totalorder %s24, 0
      %p191 = por %p189, %p190
      %p192 = scmp.ne.s32.totalorder %s184, %s186
      %p193 = scmp.eq.s32.totalorder %s29, 1
      %p194 = por %p192, %p193
      %p195 = scmp.ne.s32.totalorder %s186, %s187
      %p196 = scmp.eq.s32.totalorder %s29, 0
      %p197 = por %p195, %p196
      %p198 = scmp.ne.s32.totalorder %s186, %s187
      %p199 = scmp.eq.s32.totalorder %s30, 1
      %p200 = por %p198, %p199
      %p202 = scmp.ne.s32.totalorder %s187, %s201
      %p203 = scmp.eq.s32.totalorder %s30, 0
      %p204 = por %p202, %p203
      %s206 = sadd.s32 %s205, 1
      %p209 = scmp.eq.s32.totalorder %s24, 1
      %p210 = scmp.ne.s32.totalorder %s205, %s207
      %p211 = scmp.eq.s32.totalorder %s24, 0
      %p212 = por %p210, %p211
      %p213 = scmp.ne.s32.totalorder %s205, %s207
      %p214 = scmp.eq.s32.totalorder %s29, 1
      %p215 = por %p213, %p214
      %p216 = scmp.ne.s32.totalorder %s207, %s208
      %p217 = scmp.eq.s32.totalorder %s29, 0
      %p218 = por %p216, %p217
      %p219 = scmp.ne.s32.totalorder %s207, %s208
      %p220 = scmp.eq.s32.totalorder %s30, 1
      %p221 = por %p219, %p220
      %p223 = scmp.ne.s32.totalorder %s208, %s222
      %p224 = scmp.eq.s32.totalorder %s30, 0
      %p225 = por %p223, %p224
      %s227 = sadd.s32 %s226, 1
      %p230 = scmp.eq.s32.totalorder %s24, 1
      %p231 = scmp.ne.s32.totalorder %s226, %s228
      %p232 = scmp.eq.s32.totalorder %s24, 0
      %p233 = por %p231, %p232
      %p234 = scmp.ne.s32.totalorder %s226, %s228
      %p235 = scmp.eq.s32.totalorder %s29, 1
      %p236 = por %p234, %p235
      %p237 = scmp.ne.s32.totalorder %s228, %s229
      %p238 = scmp.eq.s32.totalorder %s29, 0
      %p239 = por %p237, %p238
      %p240 = scmp.ne.s32.totalorder %s228, %s229
      %p241 = scmp.eq.s32.totalorder %s30, 1
      %p242 = por %p240, %p241
      %p244 = scmp.ne.s32.totalorder %s229, %s243
      %p245 = scmp.eq.s32.totalorder %s30, 0
      %p246 = por %p244, %p245
      %s248 = sadd.s32 %s247, 1
      %p251 = scmp.eq.s32.totalorder %s24, 1
      %p252 = scmp.ne.s32.totalorder %s247, %s249
      %p253 = scmp.eq.s32.totalorder %s24, 0
      %p254 = por %p252, %p253
      %p255 = scmp.ne.s32.totalorder %s247, %s249
      %p256 = scmp.eq.s32.totalorder %s29, 1
      %p257 = por %p255, %p256
      %p258 = scmp.ne.s32.totalorder %s249, %s250
      %p259 = scmp.eq.s32.totalorder %s29, 0
      %p260 = por %p258, %p259
      %p261 = scmp.ne.s32.totalorder %s249, %s250
      %p262 = scmp.eq.s32.totalorder %s30, 1
      %p263 = por %p261, %p262
      %p265 = scmp.ne.s32.totalorder %s250, %s264
      %p266 = scmp.eq.s32.totalorder %s30, 0
      %p267 = por %p265, %p266
      %s269 = sadd.s32 %s268, 1
      %p272 = scmp.eq.s32.totalorder %s24, 1
      %p273 = scmp.ne.s32.totalorder %s268, %s270
      %p274 = scmp.eq.s32.totalorder %s24, 0
      %p275 = por %p273, %p274
      %p276 = scmp.ne.s32.totalorder %s268, %s270
      %p277 = scmp.eq.s32.totalorder %s29, 1
      %p278 = por %p276, %p277
      %p279 = scmp.ne.s32.totalorder %s270, %s271
      %p280 = scmp.eq.s32.totalorder %s29, 0
      %p281 = por %p279, %p280
      %p282 = scmp.ne.s32.totalorder %s270, %s271
      %p283 = scmp.eq.s32.totalorder %s30, 1
      %p284 = por %p282, %p283
      %p286 = scmp.ne.s32.totalorder %s271, %s285
      %p287 = scmp.eq.s32.totalorder %s30, 0
      %p288 = por %p286, %p287
      %s290 = sadd.s32 %s289, 1
      %p293 = scmp.eq.s32.totalorder %s24, 1
      %p294 = scmp.ne.s32.totalorder %s289, %s291
      %p295 = scmp.eq.s32.totalorder %s24, 0
      %p296 = por %p294, %p295
      %p297 = scmp.ne.s32.totalorder %s289, %s291
      %p298 = scmp.eq.s32.totalorder %s29, 1
      %p299 = por %p297, %p298
      %p300 = scmp.ne.s32.totalorder %s291, %s292
      %p301 = scmp.eq.s32.totalorder %s29, 0
      %p302 = por %p300, %p301
      %p303 = scmp.ne.s32.totalorder %s291, %s292
      %p304 = scmp.eq.s32.totalorder %s30, 1
      %p305 = por %p303, %p304
      %p307 = scmp.ne.s32.totalorder %s292, %s306
      %p308 = scmp.eq.s32.totalorder %s30, 0
      %p309 = por %p307, %p308
      %s311 = sadd.s32 %s310, 1
      %p314 = scmp.eq.s32.totalorder %s24, 1
      %p315 = scmp.ne.s32.totalorder %s310, %s312
      %p316 = scmp.eq.s32.totalorder %s24, 0
      %p317 = por %p315, %p316
      %p318 = scmp.ne.s32.totalorder %s310, %s312
      %p319 = scmp.eq.s32.totalorder %s29, 1
      %p320 = por %p318, %p319
      %p321 = scmp.ne.s32.totalorder %s312, %s313
      %p322 = scmp.eq.s32.totalorder %s29, 0
      %p323 = por %p321, %p322
      %p324 = scmp.ne.s32.totalorder %s312, %s313
      %p325 = scmp.eq.s32.totalorder %s30, 1
      %p326 = por %p324, %p325
      %p328 = scmp.ne.s32.totalorder %s313, %s327
      %p329 = scmp.eq.s32.totalorder %s30, 0
      %p330 = por %p328, %p329
      %s332 = sadd.s32 %s331, 1
      %p335 = scmp.eq.s32.totalorder %s24, 1
      %p336 = scmp.ne.s32.totalorder %s331, %s333
      %p337 = scmp.eq.s32.totalorder %s24, 0
      %p338 = por %p336, %p337
      %p339 = scmp.ne.s32.totalorder %s331, %s333
      %p340 = scmp.eq.s32.totalorder %s29, 1
      %p341 = por %p339, %p340
      %p342 = scmp.ne.s32.totalorder %s333, %s334
      %p343 = scmp.eq.s32.totalorder %s29, 0
      %p344 = por %p342, %p343
      %p345 = scmp.ne.s32.totalorder %s333, %s334
      %p346 = scmp.eq.s32.totalorder %s30, 1
      %p347 = por %p345, %p346
      %p349 = scmp.ne.s32.totalorder %s334, %s348
      %p350 = scmp.eq.s32.totalorder %s30, 0
      %p351 = por %p349, %p350
      %s352 = ssub.s32 %s24, %s31
      %p353 = scmp.eq.s32.totalorder %s352, 0
      %s355 = sadd.s32 %s354, 1
      %s356 = scalar_select %p353, %s354, %s355
      %p359 = pneg %p353
      %p360 = scmp.eq.s32.totalorder %s24, 1
      %p361 = por %p359, %p360
      %p362 = scmp.ne.s32.totalorder %s354, %s357
      %p363 = scmp.eq.s32.totalorder %s24, 0
      %p364 = por %p362, %p363
      %p365 = scmp.ne.s32.totalorder %s354, %s357
      %p366 = scmp.eq.s32.totalorder %s29, 1
      %p367 = por %p365, %p366
      %p368 = scmp.ne.s32.totalorder %s357, %s358
      %p369 = scmp.eq.s32.totalorder %s29, 0
      %p370 = por %p368, %p369
      %p371 = scmp.ne.s32.totalorder %s357, %s358
      %p372 = scmp.eq.s32.totalorder %s30, 1
      %p373 = por %p371, %p372
      %p375 = scmp.ne.s32.totalorder %s358, %s374
      %p376 = scmp.eq.s32.totalorder %s30, 0
      %p377 = por %p375, %p376
      %p378 = scmp.le.s32.totalorder 1, %s24
      %p379 = scmp.lt.s32.totalorder %s24, 3
      %p380 = pnand %p378, %p379
      %p381 = pneg %p380
      // Predicated region
      $region9: #{dnn_v2_forward.1} parent=5 // pred_check
        _
      $region10: #{dnn_v2_forward.1} parent=5 // pred_check_branch
        %383 = sbr.rel (%p380) target = $region12
      $region11: #{dnn_v2_forward.1} parent=5 // pred_region
        %s384 = ssub.s32 %s24, 1
        // Predicated region
        $region13: #{dnn_v2_forward.1} parent=11 // pred_check
          %p385 = pneg %p71
        $region14: #{dnn_v2_forward.1} parent=11 // pred_check_branch
          %387 = sbr.rel (%p385) target = $region16
        $region15: #{dnn_v2_forward.1} parent=11 // pred_region
          _
        $region16: #{dnn_v2_forward.1} parent=11 // pred_fallthru
          _
        // Predicated region
        $region17: #{dnn_v2_forward.1} parent=11 // pred_check
          %p388 = pneg %p92
        $region18: #{dnn_v2_forward.1} parent=11 // pred_check_branch
          %390 = sbr.rel (%p388) target = $region20
        $region19: #{dnn_v2_forward.1} parent=11 // pred_region
          _
        $region20: #{dnn_v2_forward.1} parent=11 // pred_fallthru
          _
        // Predicated region
        $region21: #{dnn_v2_forward.1} parent=11 // pred_check
          %p391 = pneg %p113
        $region22: #{dnn_v2_forward.1} parent=11 // pred_check_branch
          %393 = sbr.rel (%p391) target = $region24
        $region23: #{dnn_v2_forward.1} parent=11 // pred_region
          _
        $region24: #{dnn_v2_forward.1} parent=11 // pred_fallthru
          _
        // Predicated region
        $region25: #{dnn_v2_forward.1} parent=11 // pred_check
          %p394 = pneg %p134
        $region26: #{dnn_v2_forward.1} parent=11 // pred_check_branch
          %396 = sbr.rel (%p394) target = $region28
        $region27: #{dnn_v2_forward.1} parent=11 // pred_region
          _
        $region28: #{dnn_v2_forward.1} parent=11 // pred_fallthru
          _
        // Predicated region
        $region29: #{dnn_v2_forward.1} parent=11 // pred_check
          %p397 = pneg %p155
        $region30: #{dnn_v2_forward.1} parent=11 // pred_check_branch
          %399 = sbr.rel (%p397) target = $region32
        $region31: #{dnn_v2_forward.1} parent=11 // pred_region
          _
        $region32: #{dnn_v2_forward.1} parent=11 // pred_fallthru
          _
        // Predicated region
        $region33: #{dnn_v2_forward.1} parent=11 // pred_check
          %p400 = pneg %p176
        $region34: #{dnn_v2_forward.1} parent=11 // pred_check_branch
          %402 = sbr.rel (%p400) target = $region36
        $region35: #{dnn_v2_forward.1} parent=11 // pred_region
          _
        $region36: #{dnn_v2_forward.1} parent=11 // pred_fallthru
          _
        // Predicated region
        $region37: #{dnn_v2_forward.1} parent=11 // pred_check
          %p403 = pneg %p197
        $region38: #{dnn_v2_forward.1} parent=11 // pred_check_branch
          %405 = sbr.rel (%p403) target = $region40
        $region39: #{dnn_v2_forward.1} parent=11 // pred_region
          _
        $region40: #{dnn_v2_forward.1} parent=11 // pred_fallthru
          _
        // Predicated region
        $region41: #{dnn_v2_forward.1} parent=11 // pred_check
          %p406 = pneg %p218
        $region42: #{dnn_v2_forward.1} parent=11 // pred_check_branch
          %408 = sbr.rel (%p406) target = $region44
        $region43: #{dnn_v2_forward.1} parent=11 // pred_region
          _
        $region44: #{dnn_v2_forward.1} parent=11 // pred_fallthru
          _
        // Predicated region
        $region45: #{dnn_v2_forward.1} parent=11 // pred_check
          %p409 = pneg %p239
        $region46: #{dnn_v2_forward.1} parent=11 // pred_check_branch
          %411 = sbr.rel (%p409) target = $region48
        $region47: #{dnn_v2_forward.1} parent=11 // pred_region
          _
        $region48: #{dnn_v2_forward.1} parent=11 // pred_fallthru
          _
        // Predicated region
        $region49: #{dnn_v2_forward.1} parent=11 // pred_check
          %p412 = pneg %p260
        $region50: #{dnn_v2_forward.1} parent=11 // pred_check_branch
          %414 = sbr.rel (%p412) target = $region52
        $region51: #{dnn_v2_forward.1} parent=11 // pred_region
          _
        $region52: #{dnn_v2_forward.1} parent=11 // pred_fallthru
          _
        // Predicated region
        $region53: #{dnn_v2_forward.1} parent=11 // pred_check
          %p415 = pneg %p281
        $region54: #{dnn_v2_forward.1} parent=11 // pred_check_branch
          %417 = sbr.rel (%p415) target = $region56
        $region55: #{dnn_v2_forward.1} parent=11 // pred_region
          _
        $region56: #{dnn_v2_forward.1} parent=11 // pred_fallthru
          _
        // Predicated region
        $region57: #{dnn_v2_forward.1} parent=11 // pred_check
          %p418 = pneg %p302
        $region58: #{dnn_v2_forward.1} parent=11 // pred_check_branch
          %420 = sbr.rel (%p418) target = $region60
        $region59: #{dnn_v2_forward.1} parent=11 // pred_region
          _
        $region60: #{dnn_v2_forward.1} parent=11 // pred_fallthru
          _
        // Predicated region
        $region61: #{dnn_v2_forward.1} parent=11 // pred_check
          %p421 = pneg %p323
        $region62: #{dnn_v2_forward.1} parent=11 // pred_check_branch
          %423 = sbr.rel (%p421) target = $region64
        $region63: #{dnn_v2_forward.1} parent=11 // pred_region
          _
        $region64: #{dnn_v2_forward.1} parent=11 // pred_fallthru
          _
        // Predicated region
        $region65: #{dnn_v2_forward.1} parent=11 // pred_check
          %p424 = pneg %p344
        $region66: #{dnn_v2_forward.1} parent=11 // pred_check_branch
          %426 = sbr.rel (%p424) target = $region68
        $region67: #{dnn_v2_forward.1} parent=11 // pred_region
          _
        $region68: #{dnn_v2_forward.1} parent=11 // pred_fallthru
          _
      $region12: #{dnn_v2_forward.1} parent=5 // pred_fallthru
        _
      %p427 = scmp.lt.s32.totalorder %s24, 2
      // Predicated region
      $region69: #{dnn_v2_forward.1} parent=5 // pred_check
        %p428 = pneg %p427
      $region70: #{dnn_v2_forward.1} parent=5 // pred_check_branch
        %430 = sbr.rel (%p428) target = $region72
      $region71: #{dnn_v2_forward.1} parent=5 // pred_region
        // Predicated region
        $region73: #{dnn_v2_forward.1} parent=71 // pred_check
          %p431 = pneg %p44
        $region74: #{dnn_v2_forward.1} parent=71 // pred_check_branch
          %433 = sbr.rel (%p431) target = $region76
        $region75: #{dnn_v2_forward.1} parent=71 // pred_region
          %p434 = scmp.lt.s32.totalorder %s24, 1
          %s435 = scalar_select %p434, %s24, 1
          %s436 = smul.addr %s435, 4
          %s437 = smul.addr %s436, 8
          %s438 = scalar_lea.vmem %s0, %s437
        $region76: #{dnn_v2_forward.1} parent=71 // pred_fallthru
          _
      $region72: #{dnn_v2_forward.1} parent=5 // pred_fallthru
        _
      %p439 = scmp.le.s32.totalorder 1, %s24
      %p440 = scmp.lt.s32.totalorder %s24, 3
      %p441 = pnand %p439, %p440
      %p442 = pneg %p441
      // Predicated region
      $region77: #{dnn_v2_forward.1} parent=5 // pred_check
        _
      $region78: #{dnn_v2_forward.1} parent=5 // pred_check_branch
        %444 = sbr.rel (%p441) target = $region80
      $region79: #{dnn_v2_forward.1} parent=5 // pred_region
        %s445 = ssub.s32 %s24, 1
        %p446 = scmp.lt.s32.totalorder %s29, 1
        %s447 = scalar_select %p446, %s29, 1
        %s448 = smul.addr %s447, 4
        %s449 = smul.addr %s448, 8
        %s450 = scalar_lea.vmem %s0, %s449
        %p451 = pneg %p50
        %p452 = pneg %p47
        %p453 = pneg %p71
        %p454 = pneg %p68
        %p455 = pneg %p92
        %p456 = pneg %p89
        %p457 = pneg %p113
        %p458 = pneg %p110
        %p459 = pneg %p134
        %p460 = pneg %p131
        %p461 = pneg %p155
        %p462 = pneg %p152
        %p463 = pneg %p176
        %p464 = pneg %p173
        %p465 = pneg %p197
        %p466 = pneg %p194
        %p467 = pneg %p218
        %p468 = pneg %p215
        %p469 = pneg %p239
        %p470 = pneg %p236
        %p471 = pneg %p260
        %p472 = pneg %p257
        %p473 = pneg %p281
        %p474 = pneg %p278
        %p475 = pneg %p302
        %p476 = pneg %p299
        %p477 = pneg %p323
        %p478 = pneg %p320
        %p479 = pneg %p344
        %p480 = pneg %p341
        %p481 = pneg %p370
        %p482 = pneg %p367
        %s483 = sand.u32 %s357, 1
        %s484 = scalar_lea.sflag [#allocation3], %s483
        %s485 = sand.u32 %s357, 1
        %s486 = scalar_lea.vmem [#allocation2], %s485
        %p487 = scmp.lt.s32.totalorder %s29, 1
        %s488 = scalar_select %p487, %s29, 1
        %s489 = smul.addr %s488, 4
        %s490 = smul.addr %s489, 8
        %s491 = scalar_lea.vmem %s0, %s490
        %v493 = vld [vmem:[%s491] sm:$0xff]
        %v494 = vld [vmem:[%s491 + $0x8] sm:$0xff]
        %v495 = vld [vmem:[%s491 + $0x10] sm:$0xff]
        %v496 = vld [vmem:[%s491 + $0x18] sm:$0xff]
        %vm501 = vcmask 1046528
        %v502 = vrot.slane %v493, 1
        %v503 = vrot.slane %v494, 1
        %v504 = vsel %vm501, %v502, %v503
        %v505 = vrot.slane %v495, 1
        %v506 = vsel %vm501, %v503, %v505
        %v507 = vrot.slane %v496, 1
        %v508 = vsel %vm501, %v505, %v507
        %509 = vrot.lane.b32.xlu0 %v504, 32
        %v510 = vpop.permute.xlu0 %509
        %511 = vrot.lane.b32.xlu0 %v506, 32
        %v512 = vpop.permute.xlu0 %511
        %513 = vrot.lane.b32.xlu0 %v508, 32
        %v514 = vpop.permute.xlu0 %513
        %515 = vrot.lane.b32.xlu0 %v507, 32
        %v516 = vpop.permute.xlu0 %515
        %vm521 = vcmask 1045504
        %v522 = vrot.slane %v493, 2
        %v523 = vrot.slane %v494, 2
        %v524 = vsel %vm521, %v522, %v523
        %v525 = vrot.slane %v495, 2
        %v526 = vsel %vm521, %v523, %v525
        %v527 = vrot.slane %v496, 2
        %v528 = vsel %vm521, %v525, %v527
        %529 = vrot.lane.b32.xlu0 %v524, 64
        %v530 = vpop.permute.xlu0 %529
        %531 = vrot.lane.b32.xlu0 %v526, 64
        %v532 = vpop.permute.xlu0 %531
        %533 = vrot.lane.b32.xlu0 %v528, 64
        %v534 = vpop.permute.xlu0 %533
        %535 = vrot.lane.b32.xlu0 %v527, 64
        %v536 = vpop.permute.xlu0 %535
        %vm541 = vcmask 1044480
        %v542 = vrot.slane %v493, 3
        %v543 = vrot.slane %v494, 3
        %v544 = vsel %vm541, %v542, %v543
        %v545 = vrot.slane %v495, 3
        %v546 = vsel %vm541, %v543, %v545
        %v547 = vrot.slane %v496, 3
        %v548 = vsel %vm541, %v545, %v547
        %549 = vrot.lane.b32.xlu0 %v544, 96
        %v550 = vpop.permute.xlu0 %549
        %551 = vrot.lane.b32.xlu0 %v546, 96
        %v552 = vpop.permute.xlu0 %551
        %553 = vrot.lane.b32.xlu0 %v548, 96
        %v554 = vpop.permute.xlu0 %553
        %555 = vrot.lane.b32.xlu0 %v547, 96
        %v556 = vpop.permute.xlu0 %555
        %vm561 = vcmask 1043456
        %v562 = vrot.slane %v493, 4
        %v563 = vrot.slane %v494, 4
        %v564 = vsel %vm561, %v562, %v563
        %v565 = vrot.slane %v495, 4
        %v566 = vsel %vm561, %v563, %v565
        %v567 = vrot.slane %v496, 4
        %v568 = vsel %vm561, %v565, %v567
        %vm573 = vcmask 261120
        %v574 = vsel %vm573, %v493, %v510
        %v575 = vsel %vm573, %v494, %v512
        %v576 = vsel %vm573, %v495, %v514
        %v577 = vsel %vm573, %v496, %v516
        %vm578 = vcmask 523264
        %v579 = vsel %vm578, %v574, %v530
        %v580 = vsel %vm578, %v575, %v532
        %v581 = vsel %vm578, %v576, %v534
        %v582 = vsel %vm578, %v577, %v536
        %vm583 = vcmask 785408
        %v584 = vsel %vm583, %v579, %v550
        %v585 = vsel %vm583, %v580, %v552
        %v586 = vsel %vm583, %v581, %v554
        %v587 = vsel %vm583, %v582, %v556
        %v588 = vpack.c.bf16 %v585, %v584
        %v589 = vpack.c.bf16 %v566, %v564
        %v590 = vpack.c.bf16 %v587, %v586
        %v591 = vpack.c.bf16 %v567, %v568
        %v592 = vld [vmem:[%s1] sm:$0xff]
        %v593 = vld [vmem:[%s1 + $0x8] sm:$0xff]
        %v594 = vld [vmem:[%s1 + $0x10] sm:$0xff]
        %v595 = vld [vmem:[%s1 + $0x18] sm:$0xff]
        %v596 = vld [vmem:[%s1 + $0x20] sm:$0xff]
        %v597 = vld [vmem:[%s1 + $0x28] sm:$0xff]
        %v598 = vld [vmem:[%s1 + $0x30] sm:$0xff]
        %v599 = vld [vmem:[%s1 + $0x38] sm:$0xff]
        %v600 = vld [vmem:[%s1 + $0x40] sm:$0xff]
        %v601 = vld [vmem:[%s1 + $0x48] sm:$0xff]
        %v602 = vld [vmem:[%s1 + $0x50] sm:$0xff]
        %v603 = vld [vmem:[%s1 + $0x58] sm:$0xff]
        %v604 = vld [vmem:[%s1 + $0x60] sm:$0xff]
        %v605 = vld [vmem:[%s1 + $0x68] sm:$0xff]
        %v606 = vld [vmem:[%s1 + $0x70] sm:$0xff]
        %v607 = vld [vmem:[%s1 + $0x78] sm:$0xff]
        %v608 = vld [vmem:[%s1 + $0x80] sm:$0xff]
        %v609 = vld [vmem:[%s1 + $0x88] sm:$0xff]
        %v610 = vld [vmem:[%s1 + $0x90] sm:$0xff]
        %v611 = vld [vmem:[%s1 + $0x98] sm:$0xff]
        %v612 = vld [vmem:[%s2] sm:$0x3]
        %v614 = vlaneseq
        %v615 = vshrl.u32 %v614, 7
        %v616 = vsub.s32 0, %v615
        %v617 = vrot.slane %v612, %v616
        %v618 = vlaneseq
        %v619 = vshrl.u32 %v618, 7
        %v620 = vsub.s32 1, %v619
        %v621 = vrot.slane %v612, %v620
        %v644 = vunpack.c.l.b16 %v592
        %v645 = vunpack.c.h.b16 %v592
        %v646 = vunpack.c.l.b16 %v593
        %v647 = vunpack.c.h.b16 %v593
        %v648 = vunpack.c.l.b16 %v594
        %v649 = vunpack.c.h.b16 %v594
        %v650 = vunpack.c.l.b16 %v595
        %v651 = vunpack.c.h.b16 %v595
        %v652 = vunpack.c.l.b16 %v596
        %v653 = vunpack.c.h.b16 %v596
        %v654 = vunpack.c.l.b16 %v597
        %v655 = vunpack.c.h.b16 %v597
        %v656 = vunpack.c.l.b16 %v598
        %v657 = vunpack.c.h.b16 %v598
        %v658 = vunpack.c.l.b16 %v599
        %v659 = vunpack.c.h.b16 %v599
        %v660 = vunpack.c.l.b16 %v600
        %v661 = vunpack.c.h.b16 %v600
        %v662 = vunpack.c.l.b16 %v601
        %v663 = vunpack.c.h.b16 %v601
        %v664 = vunpack.c.l.b16 %v602
        %v665 = vunpack.c.h.b16 %v602
        %v666 = vunpack.c.l.b16 %v603
        %v667 = vunpack.c.h.b16 %v603
        %v668 = vunpack.c.l.b16 %v604
        %v669 = vunpack.c.h.b16 %v604
        %v670 = vunpack.c.l.b16 %v605
        %v671 = vunpack.c.h.b16 %v605
        %v672 = vunpack.c.l.b16 %v606
        %v673 = vunpack.c.h.b16 %v606
        %v674 = vunpack.c.l.b16 %v607
        %v675 = vunpack.c.h.b16 %v607
        %v676 = vunpack.c.l.b16 %v608
        %v677 = vunpack.c.h.b16 %v608
        %v678 = vunpack.c.l.b16 %v609
        %v679 = vunpack.c.h.b16 %v609
        %v680 = vunpack.c.l.b16 %v610
        %v681 = vunpack.c.h.b16 %v610
        %v682 = vunpack.c.l.b16 %v611
        %v683 = vunpack.c.h.b16 %v611
        %v684 = vpack.c.b16 %v646, %v644
        %v685 = vpack.c.b16 %v647, %v645
        %v686 = vpack.c.b16 %v650, %v648
        %v687 = vpack.c.b16 %v651, %v649
        %v688 = vpack.c.b16 %v654, %v652
        %v689 = vpack.c.b16 %v655, %v653
        %v690 = vpack.c.b16 %v658, %v656
        %v691 = vpack.c.b16 %v659, %v657
        %v692 = vpack.c.b16 %v662, %v660
        %v693 = vpack.c.b16 %v663, %v661
        %v694 = vpack.c.b16 %v666, %v664
        %v695 = vpack.c.b16 %v667, %v665
        %v696 = vpack.c.b16 %v670, %v668
        %v697 = vpack.c.b16 %v671, %v669
        %v698 = vpack.c.b16 %v674, %v672
        %v699 = vpack.c.b16 %v675, %v673
        %v700 = vpack.c.b16 %v678, %v676
        %v701 = vpack.c.b16 %v679, %v677
        %v702 = vpack.c.b16 %v682, %v680
        %v703 = vpack.c.b16 %v683, %v681
        %v725 = vsel %vm573, %v589, 0
        %v728 = vsel %vm573, %v591, 0
        %730 = vmatprep.subr.bf16.mxu0 %v685
        %731 = vmatpush1.bf16.msra.mxu0 %v684
        %732 = vmatprep.subr.bf16.mxu0 %v687
        %733 = vmatpush1.bf16.msra.mxu0 %v686
        %734 = vmatprep.subr.bf16.mxu0 %v689
        %735 = vmatpush1.bf16.msra.mxu0 %v688
        %736 = vmatprep.subr.bf16.mxu0 %v691
        %737 = vmatpush1.bf16.msra.mxu0 %v690
        %738 = vmatprep.subr.bf16.mxu0 %v693
        %739 = vmatpush1.bf16.msra.mxu0 %v692
        %740 = vmatprep.subr.bf16.mxu0 %v695
        %741 = vmatpush1.bf16.msra.mxu0 %v694
        %742 = vmatprep.subr.bf16.mxu0 %v697
        %743 = vmatpush1.bf16.msra.mxu0 %v696
        %744 = vmatprep.subr.bf16.mxu0 %v699
        %745 = vmatpush1.bf16.msra.mxu0 %v698
        %746 = vmatprep.subr.bf16.mxu0 %v701
        %747 = vmatpush1.bf16.msra.mxu0 %v700
        %748 = vmatprep.subr.bf16.mxu0 %v703
        %749 = vmatpush1.bf16.msra.mxu0 %v702
        %750 = vmatprep.subr.bf16.mxu0 0
        %751 = vmatpush1.bf16.msra.mxu0 0
        %752 = vmatprep.subr.bf16.mxu0 0
        %753 = vmatpush1.bf16.msra.mxu0 0
        %754 = vmatprep.subr.bf16.mxu0 0
        %755 = vmatpush1.bf16.msra.mxu0 0
        %756 = vmatprep.subr.bf16.mxu0 0
        %757 = vmatpush1.bf16.msra.mxu0 0
        %758 = vmatprep.subr.bf16.mxu0 0
        %759 = vmatpush1.bf16.msra.mxu0 0
        %760 = vmatprep.subr.bf16.mxu0 0
        %761 = vmatpush1.bf16.msra.mxu0 0
        %762 = vmatprep.mubr.bf16.mxu0 %v725
        %763 = vmatmul.mubr.bf16.gmra.mrb[0].mxu0 %v588
        %v764 = vpop.f32.mrb[0].mxu0
        %v765 = vadd.f32 %v617, %v764
        %v766 = vpop.f32.mrb[0].mxu0
        %v767 = vadd.f32 %v621, %v766
        %v768 = vpop.f32.mrb[0].mxu0
        %v769 = vadd.f32 %v617, %v768
        %v770 = vpop.f32.mrb[0].mxu0
        %v771 = vadd.f32 %v621, %v770
        %772 = vmatprep.mubr.bf16.mxu0 %v728
        %773 = vmatmul.mubr.bf16.gmra.mrb[0].mxu0 %v590
        %v774 = vpop.f32.mrb[0].mxu0
        %v775 = vadd.f32 %v617, %v774
        %v776 = vpop.f32.mrb[0].mxu0
        %v777 = vadd.f32 %v621, %v776
        %v778 = vpop.f32.mrb[0].mxu0
        %v779 = vadd.f32 %v617, %v778
        %v780 = vpop.f32.mrb[0].mxu0
        %v781 = vadd.f32 %v621, %v780
        %782 = vdwg.mxu0
        %v783 = vmax.f32 %v765, 0.0
        %v784 = vmax.f32 %v767, 0.0
        %v785 = vmax.f32 %v769, 0.0
        %v786 = vmax.f32 %v771, 0.0
        %v787 = vmax.f32 %v775, 0.0
        %v788 = vmax.f32 %v777, 0.0
        %v789 = vmax.f32 %v779, 0.0
        %v790 = vmax.f32 %v781, 0.0
        %799 = vrot.lane.b32.xlu0 %v783, 127
        %v800 = vpop.permute.xlu0 %799
        %801 = vrot.lane.b32.xlu0 %v784, 127
        %v802 = vpop.permute.xlu0 %801
        %803 = vrot.lane.b32.xlu0 %v785, 127
        %v804 = vpop.permute.xlu0 %803
        %805 = vrot.lane.b32.xlu0 %v786, 127
        %v806 = vpop.permute.xlu0 %805
        %807 = vrot.lane.b32.xlu0 %v787, 127
        %v808 = vpop.permute.xlu0 %807
        %809 = vrot.lane.b32.xlu0 %v788, 127
        %v810 = vpop.permute.xlu0 %809
        %811 = vrot.lane.b32.xlu0 %v789, 127
        %v812 = vpop.permute.xlu0 %811
        %813 = vrot.lane.b32.xlu0 %v790, 127
        %v814 = vpop.permute.xlu0 %813
        %vm815 = vcmask 1039360
        %v816 = vsel %vm815, %v800, %v802
        %v817 = vsel %vm815, %v804, %v806
        %v818 = vsel %vm815, %v808, %v810
        %v819 = vsel %vm815, %v812, %v814
        %v828 = vmax.f32 %v783, %v816
        %v829 = vmax.f32 %v784, %v802
        %v830 = vmax.f32 %v785, %v817
        %v831 = vmax.f32 %v786, %v806
        %v832 = vmax.f32 %v787, %v818
        %v833 = vmax.f32 %v788, %v810
        %v834 = vmax.f32 %v789, %v819
        %v835 = vmax.f32 %v790, %v814
        %v844 = vrot.slane %v828, 1
        %v845 = vrot.slane %v830, 1
        %v846 = vsel %vm501, %v844, %v845
        %v847 = vrot.slane %v829, 1
        %v848 = vrot.slane %v831, 1
        %v849 = vsel %vm501, %v847, %v848
        %v850 = vrot.slane %v832, 1
        %v851 = vsel %vm501, %v845, %v850
        %v852 = vrot.slane %v833, 1
        %v853 = vsel %vm501, %v848, %v852
        %v854 = vrot.slane %v834, 1
        %v855 = vsel %vm501, %v850, %v854
        %v856 = vrot.slane %v835, 1
        %v857 = vsel %vm501, %v852, %v856
        %v866 = vmax.f32 %v828, %v846
        %v867 = vmax.f32 %v829, %v849
        %v868 = vmax.f32 %v830, %v851
        %v869 = vmax.f32 %v831, %v853
        %v870 = vmax.f32 %v832, %v855
        %v871 = vmax.f32 %v833, %v857
        %v872 = vmax.f32 %v834, %v854
        %v873 = vmax.f32 %v835, %v856
        %v874 = vld [vmem:[%s3] sm:$0xff]
        %v875 = vld [vmem:[%s3 + $0x8] sm:$0x3f]
        %vm876 = vcmask 220160
        %v878 = vsel %vm876, %v874, 0
        %v881 = vsel %vm876, %v875, 0
        %vm883 = vcmask 1042432
        %v885 = vsel %vm883, %v872, 0
        %v888 = vsel %vm883, %v873, 0
        %890 = vmatprep.subr.mxu0 %v867
        %891 = vmatpush1.msra.mxu0 %v866
        %892 = vmatprep.subr.mxu0 %v869
        %893 = vmatpush1.msra.mxu0 %v868
        %894 = vmatprep.subr.mxu0 %v871
        %895 = vmatpush1.msra.mxu0 %v870
        %896 = vmatprep.subr.mxu0 %v888
        %897 = vmatpush1.msra.mxu0 %v885
        %898 = vmatprep.subr.mxu0 0.0
        %899 = vmatpush1.msra.mxu0 0.0
        %900 = vmatprep.subr.mxu0 0.0
        %901 = vmatpush1.msra.mxu0 0.0
        %902 = vmatprep.subr.mxu0 0.0
        %903 = vmatpush1.msra.mxu0 0.0
        %904 = vmatprep.subr.mxu0 0.0
        %905 = vmatpush1.msra.mxu0 0.0
        %906 = vmatprep.subr.mxu0 0.0
        %907 = vmatpush1.msra.mxu0 0.0
        %908 = vmatprep.subr.mxu0 0.0
        %909 = vmatpush1.msra.mxu0 0.0
        %910 = vmatprep.subr.mxu0 0.0
        %911 = vmatpush1.msra.mxu0 0.0
        %912 = vmatprep.subr.mxu0 0.0
        %913 = vmatpush1.msra.mxu0 0.0
        %914 = vmatprep.subr.mxu0 0.0
        %915 = vmatpush1.msra.mxu0 0.0
        %916 = vmatprep.subr.mxu0 0.0
        %917 = vmatpush1.msra.mxu0 0.0
        %918 = vmatprep.subr.mxu0 0.0
        %919 = vmatpush1.msra.mxu0 0.0
        %920 = vmatprep.subr.mxu0 0.0
        %921 = vmatpush1.msra.mxu0 0.0
        %922 = vmatprep.subr.mxu0 0.0
        %923 = vmatpush1.msra.mxu0 0.0
        %924 = vmatprep.subr.mxu0 0.0
        %925 = vmatpush1.msra.mxu0 0.0
        %926 = vmatprep.subr.mxu0 0.0
        %927 = vmatpush1.msra.mxu0 0.0
        %928 = vmatprep.subr.mxu0 0.0
        %929 = vmatpush1.msra.mxu0 0.0
        %930 = vmatprep.subr.mxu0 0.0
        %931 = vmatpush1.msra.mxu0 0.0
        %932 = vmatprep.subr.mxu0 0.0
        %933 = vmatpush1.msra.mxu0 0.0
        %934 = vmatprep.subr.mxu0 0.0
        %935 = vmatpush1.msra.mxu0 0.0
        %936 = vmatprep.subr.mxu0 0.0
        %937 = vmatpush1.msra.mxu0 0.0
        %938 = vmatprep.subr.mxu0 0.0
        %939 = vmatpush1.msra.mxu0 0.0
        %940 = vmatprep.subr.mxu0 0.0
        %941 = vmatpush1.msra.mxu0 0.0
        %942 = vmatprep.subr.mxu0 0.0
        %943 = vmatpush1.msra.mxu0 0.0
        %944 = vmatprep.subr.mxu0 0.0
        %945 = vmatpush1.msra.mxu0 0.0
        %946 = vmatprep.subr.mxu0 0.0
        %947 = vmatpush1.msra.mxu0 0.0
        %948 = vmatprep.subr.mxu0 0.0
        %949 = vmatpush1.msra.mxu0 0.0
        %950 = vmatprep.subr.mxu0 0.0
        %951 = vmatpush1.msra.mxu0 0.0
        %952 = vmatprep.subr.mxu0 0.0
        %953 = vmatpush1.msra.mxu0 0.0
        %954 = vmatprep.mubr.f32.mxu0 0.0
        %955 = vmatmul.mubr.f32.gmra.mrb[0].mxu0 %v878
        %v956 = vpop.f32.mrb[0].mxu0
        %v957 = vadd.f32 0.0, %v956
        %v958 = vpop.f32.mrb[0].mxu0
        %v959 = vadd.f32 0.0, %v958
        %960 = vmatprep.mubr.f32.mxu0 0.0
        %961 = vmatmul.mubr.f32.gmra.mrb[0].mxu0 %v881
        %v962 = vpop.f32.mrb[0].mxu0
        %v963 = vadd.f32 0.0, %v962
        %v964 = vpop.f32.mrb[0].mxu0
        %v965 = vadd.f32 0.0, %v964
        %966 = vdwg.mxu0
        %v967 = vld [vmem:[%s4] sm:$0xff]
        %v968 = vld [vmem:[%s4 + $0x8] sm:$0xff]
        %v969 = vld [vmem:[%s4 + $0x10] sm:$0xff]
        %v970 = vld [vmem:[%s4 + $0x18] sm:$0xff]
        %v971 = vld [vmem:[%s4 + $0x20] sm:$0xff]
        %v972 = vld [vmem:[%s4 + $0x28] sm:$0xff]
        %v973 = vld [vmem:[%s4 + $0x30] sm:$0xff]
        %v974 = vld [vmem:[%s4 + $0x38] sm:$0xff]
        %v975 = vld [vmem:[%s4 + $0x40] sm:$0xff]
        %v976 = vld [vmem:[%s4 + $0x48] sm:$0xff]
        %v977 = vld [vmem:[%s4 + $0x50] sm:$0xff]
        %v978 = vld [vmem:[%s4 + $0x58] sm:$0xff]
        %v979 = vld [vmem:[%s4 + $0x60] sm:$0xff]
        %v980 = vld [vmem:[%s4 + $0x68] sm:$0xff]
        %v981 = vld [vmem:[%s4 + $0x70] sm:$0xff]
        %v982 = vld [vmem:[%s4 + $0x78] sm:$0xff]
        %v983 = vld [vmem:[%s4 + $0x80] sm:$0xff]
        %v984 = vld [vmem:[%s4 + $0x88] sm:$0xff]
        %v985 = vld [vmem:[%s4 + $0x90] sm:$0xff]
        %v986 = vld [vmem:[%s4 + $0x98] sm:$0xff]
        %v987 = vld [vmem:[%s4 + $0xa0] sm:$0x7f]
        %vm988 = vcmask 318464
        %v990 = vsel %vm988, %v959, 0
        %v993 = vsel %vm988, %v965, 0
        %v996 = vsel %vm501, %v987, 0
        %998 = vmatprep.subr.mxu0 0.0
        %999 = vmatpush1.msra.mxu0 %v967
        %1000 = vmatprep.subr.mxu0 0.0
        %1001 = vmatpush1.msra.mxu0 %v968
        %1002 = vmatprep.subr.mxu0 0.0
        %1003 = vmatpush1.msra.mxu0 %v969
        %1004 = vmatprep.subr.mxu0 0.0
        %1005 = vmatpush1.msra.mxu0 %v970
        %1006 = vmatprep.subr.mxu0 0.0
        %1007 = vmatpush1.msra.mxu0 %v971
        %1008 = vmatprep.subr.mxu0 0.0
        %1009 = vmatpush1.msra.mxu0 %v972
        %1010 = vmatprep.subr.mxu0 0.0
        %1011 = vmatpush1.msra.mxu0 %v973
        %1012 = vmatprep.subr.mxu0 0.0
        %1013 = vmatpush1.msra.mxu0 %v974
        %1014 = vmatprep.subr.mxu0 0.0
        %1015 = vmatpush1.msra.mxu0 %v975
        %1016 = vmatprep.subr.mxu0 0.0
        %1017 = vmatpush1.msra.mxu0 %v976
        %1018 = vmatprep.subr.mxu0 0.0
        %1019 = vmatpush1.msra.mxu0 %v977
        %1020 = vmatprep.subr.mxu0 0.0
        %1021 = vmatpush1.msra.mxu0 %v978
        %1022 = vmatprep.subr.mxu0 0.0
        %1023 = vmatpush1.msra.mxu0 %v979
        %1024 = vmatprep.subr.mxu0 0.0
        %1025 = vmatpush1.msra.mxu0 %v980
        %1026 = vmatprep.subr.mxu0 0.0
        %1027 = vmatpush1.msra.mxu0 %v981
        %1028 = vmatprep.subr.mxu0 0.0
        %1029 = vmatpush1.msra.mxu0 %v982
        %1030 = vmatprep.subr.mxu0 0.0
        %1031 = vmatpush1.msra.mxu0 %v983
        %1032 = vmatprep.subr.mxu0 0.0
        %1033 = vmatpush1.msra.mxu0 %v984
        %1034 = vmatprep.subr.mxu0 0.0
        %1035 = vmatpush1.msra.mxu0 %v985
        %1036 = vmatprep.subr.mxu0 0.0
        %1037 = vmatpush1.msra.mxu0 %v986
        %1038 = vmatprep.subr.mxu0 0.0
        %1039 = vmatpush1.msra.mxu0 %v996
        %1040 = vmatprep.subr.mxu0 0.0
        %1041 = vmatpush1.msra.mxu0 0.0
        %1042 = vmatprep.subr.mxu0 0.0
        %1043 = vmatpush1.msra.mxu0 0.0
        %1044 = vmatprep.subr.mxu0 0.0
        %1045 = vmatpush1.msra.mxu0 0.0
        %1046 = vmatprep.subr.mxu0 0.0
        %1047 = vmatpush1.msra.mxu0 0.0
        %1048 = vmatprep.subr.mxu0 0.0
        %1049 = vmatpush1.msra.mxu0 0.0
        %1050 = vmatprep.subr.mxu0 0.0
        %1051 = vmatpush1.msra.mxu0 0.0
        %1052 = vmatprep.subr.mxu0 0.0
        %1053 = vmatpush1.msra.mxu0 0.0
        %1054 = vmatprep.subr.mxu0 0.0
        %1055 = vmatpush1.msra.mxu0 0.0
        %1056 = vmatprep.subr.mxu0 0.0
        %1057 = vmatpush1.msra.mxu0 0.0
        %1058 = vmatprep.subr.mxu0 0.0
        %1059 = vmatpush1.msra.mxu0 0.0
        %1060 = vmatprep.subr.mxu0 0.0
        %1061 = vmatpush1.msra.mxu0 0.0
        %1062 = vmatprep.mubr.f32.mxu0 %v990
        %1063 = vmatmul.mubr.f32.gmra.mrb[0].mxu0 %v957
        %v1064 = vpop.f32.mrb[0].mxu0
        %v1065 = vadd.f32 0.0, %v1064
        %v1066 = vpop.f32.mrb[0].mxu0
        %1067 = vmatprep.mubr.f32.mxu0 %v993
        %1068 = vmatmul.mubr.f32.gmra.mrb[0].mxu0 %v963
        %v1069 = vpop.f32.mrb[0].mxu0
        %v1070 = vadd.f32 0.0, %v1069
        %v1071 = vpop.f32.mrb[0].mxu0
        %1072 = vdwg.mxu0
        %v1075 = vrot.slane %v1065, 1
        %v1076 = vrot.slane %v1070, 1
        %v1077 = vsel %vm501, %v1075, %v1076
        %1078 = vrot.lane.b32.xlu0 %v1077, 84
        %v1079 = vpop.permute.xlu0 %1078
        %1080 = vrot.lane.b32.xlu0 %v1076, 84
        %v1081 = vpop.permute.xlu0 %1080
        %v1084 = vrot.slane %v1065, 2
        %v1085 = vrot.slane %v1070, 2
        %v1086 = vsel %vm521, %v1084, %v1085
        %1087 = vrot.lane.b32.xlu0 %v1086, 40
        %v1088 = vpop.permute.xlu0 %1087
        %1089 = vrot.lane.b32.xlu0 %v1085, 40
        %v1090 = vpop.permute.xlu0 %1089
        %v1093 = vrot.slane %v1065, 3
        %v1094 = vrot.slane %v1070, 3
        %v1095 = vsel %vm541, %v1093, %v1094
        %1096 = vrot.lane.b32.xlu0 %v1095, 124
        %v1097 = vpop.permute.xlu0 %1096
        %1098 = vrot.lane.b32.xlu0 %v1094, 124
        %v1099 = vpop.permute.xlu0 %1098
        %v1102 = vrot.slane %v1065, 4
        %v1103 = vrot.slane %v1070, 4
        %v1104 = vsel %vm561, %v1102, %v1103
        %1105 = vrot.lane.b32.xlu0 %v1104, 80
        %v1106 = vpop.permute.xlu0 %1105
        %1107 = vrot.lane.b32.xlu0 %v1103, 80
        %v1108 = vpop.permute.xlu0 %1107
        %vm1111 = vcmask 687104
        %v1112 = vsel %vm1111, %v1065, %v1079
        %v1113 = vsel %vm1111, %v1070, %v1081
        %vm1114 = vcmask 326656
        %v1115 = vsel %vm1114, %v1079, %v1088
        %v1116 = vsel %vm1114, %v1081, %v1090
        %vm1117 = vcmask 1014784
        %v1118 = vsel %vm1117, %v1115, %v1097
        %v1119 = vsel %vm1117, %v1116, %v1099
        %vm1120 = vcmask 654336
        %v1121 = vsel %vm1120, %v1097, %v1106
        %v1122 = vsel %vm1120, %v1099, %v1108
        %v1123 = vpack.c.bf16 %v1113, %v1112
        %v1124 = vpack.c.bf16 %v1119, %v1118
        %v1125 = vpack.c.bf16 %v1122, %v1121
        %v1126 = vpack.c.bf16 %v1108, %v1106
        %v1127 = vld [vmem:[%s5] sm:$0xff]
        %v1128 = vld [vmem:[%s5 + $0x8] sm:$0xff]
        %v1129 = vld [vmem:[%s5 + $0x10] sm:$0xff]
        %v1130 = vld [vmem:[%s5 + $0x18] sm:$0xff]
        %v1131 = vld [vmem:[%s5 + $0x20] sm:$0xff]
        %v1132 = vld [vmem:[%s5 + $0x28] sm:$0xff]
        %v1133 = vld [vmem:[%s5 + $0x30] sm:$0xff]
        %v1134 = vld [vmem:[%s5 + $0x38] sm:$0xff]
        %v1135 = vld [vmem:[%s5 + $0x40] sm:$0xff]
        %v1136 = vld [vmem:[%s5 + $0x48] sm:$0xff]
        %v1137 = vld [vmem:[%s5 + $0x50] sm:$0xff]
        %v1138 = vld [vmem:[%s5 + $0x58] sm:$0xff]
        %v1139 = vld [vmem:[%s5 + $0x60] sm:$0xff]
        %v1140 = vld [vmem:[%s5 + $0x68] sm:$0xff]
        %v1141 = vld [vmem:[%s5 + $0x70] sm:$0xff]
        %v1142 = vld [vmem:[%s5 + $0x78] sm:$0xff]
        %v1143 = vld [vmem:[%s5 + $0x80] sm:$0xff]
        %v1144 = vld [vmem:[%s5 + $0x88] sm:$0xff]
        %v1145 = vld [vmem:[%s5 + $0x90] sm:$0xff]
        %v1146 = vld [vmem:[%s5 + $0x98] sm:$0xff]
        %v1147 = vld [vmem:[%s5 + $0xa0] sm:$0xff]
        %v1148 = vld [vmem:[%s5 + $0xa8] sm:$0xff]
        %v1149 = vld [vmem:[%s5 + $0xb0] sm:$0xff]
        %v1150 = vld [vmem:[%s5 + $0xb8] sm:$0xff]
        %v1151 = vld [vmem:[%s5 + $0xc0] sm:$0xff]
        %v1152 = vld [vmem:[%s5 + $0xc8] sm:$0xff]
        %v1153 = vld [vmem:[%s5 + $0xd0] sm:$0xff]
        %v1154 = vld [vmem:[%s5 + $0xd8] sm:$0xff]
        %v1155 = vld [vmem:[%s5 + $0xe0] sm:$0xff]
        %v1156 = vld [vmem:[%s5 + $0xe8] sm:$0xff]
        %v1157 = vld [vmem:[%s5 + $0xf0] sm:$0xff]
        %v1158 = vld [vmem:[%s5 + $0xf8] sm:$0xff]
        %v1159 = vld [vmem:[%s5 + $0x100] sm:$0xff]
        %v1160 = vld [vmem:[%s5 + $0x108] sm:$0xff]
        %v1161 = vld [vmem:[%s5 + $0x110] sm:$0xff]
        %v1162 = vld [vmem:[%s5 + $0x118] sm:$0xff]
        %v1163 = vld [vmem:[%s5 + $0x120] sm:$0xff]
        %v1164 = vld [vmem:[%s5 + $0x128] sm:$0xff]
        %v1165 = vld [vmem:[%s5 + $0x130] sm:$0xff]
        %v1166 = vld [vmem:[%s5 + $0x138] sm:$0xff]
        %v1167 = vld [vmem:[%s5 + $0x140] sm:$0xff]
        %v1168 = vld [vmem:[%s5 + $0x148] sm:$0xff]
        %v1169 = vld [vmem:[%s5 + $0x150] sm:$0xff]
        %v1170 = vld [vmem:[%s5 + $0x158] sm:$0xff]
        %v1171 = vld [vmem:[%s5 + $0x160] sm:$0xff]
        %v1172 = vld [vmem:[%s5 + $0x168] sm:$0xff]
        %v1173 = vld [vmem:[%s5 + $0x170] sm:$0xff]
        %v1174 = vld [vmem:[%s5 + $0x178] sm:$0xff]
        %v1175 = vld [vmem:[%s5 + $0x180] sm:$0xff]
        %v1176 = vld [vmem:[%s5 + $0x188] sm:$0xff]
        %v1177 = vld [vmem:[%s5 + $0x190] sm:$0xff]
        %v1178 = vld [vmem:[%s5 + $0x198] sm:$0xff]
        %v1179 = vld [vmem:[%s5 + $0x1a0] sm:$0x33]
        %v1180 = vld [vmem:[%s6] sm:$0x3]
        %v1182 = vlaneseq
        %v1183 = vshrl.u32 %v1182, 7
        %v1184 = vsub.s32 0, %v1183
        %v1185 = vrot.slane %v1180, %v1184
        %v1186 = vlaneseq
        %v1187 = vshrl.u32 %v1186, 7
        %v1188 = vsub.s32 1, %v1187
        %v1189 = vrot.slane %v1180, %v1188
        %v1245 = vunpack.c.l.b16 %v1127
        %v1246 = vunpack.c.h.b16 %v1127
        %v1247 = vunpack.c.l.b16 %v1128
        %v1248 = vunpack.c.h.b16 %v1128
        %v1249 = vunpack.c.l.b16 %v1129
        %v1250 = vunpack.c.h.b16 %v1129
        %v1251 = vunpack.c.l.b16 %v1130
        %v1252 = vunpack.c.h.b16 %v1130
        %v1253 = vunpack.c.l.b16 %v1131
        %v1254 = vunpack.c.h.b16 %v1131
        %v1255 = vunpack.c.l.b16 %v1132
        %v1256 = vunpack.c.h.b16 %v1132
        %v1257 = vunpack.c.l.b16 %v1133
        %v1258 = vunpack.c.h.b16 %v1133
        %v1259 = vunpack.c.l.b16 %v1134
        %v1260 = vunpack.c.h.b16 %v1134
        %v1261 = vunpack.c.l.b16 %v1135
        %v1262 = vunpack.c.h.b16 %v1135
        %v1263 = vunpack.c.l.b16 %v1136
        %v1264 = vunpack.c.h.b16 %v1136
        %v1265 = vunpack.c.l.b16 %v1137
        %v1266 = vunpack.c.h.b16 %v1137
        %v1267 = vunpack.c.l.b16 %v1138
        %v1268 = vunpack.c.h.b16 %v1138
        %v1269 = vunpack.c.l.b16 %v1139
        %v1270 = vunpack.c.h.b16 %v1139
        %v1271 = vunpack.c.l.b16 %v1140
        %v1272 = vunpack.c.h.b16 %v1140
        %v1273 = vunpack.c.l.b16 %v1141
        %v1274 = vunpack.c.h.b16 %v1141
        %v1275 = vunpack.c.l.b16 %v1142
        %v1276 = vunpack.c.h.b16 %v1142
        %v1277 = vunpack.c.l.b16 %v1143
        %v1278 = vunpack.c.h.b16 %v1143
        %v1279 = vunpack.c.l.b16 %v1144
        %v1280 = vunpack.c.h.b16 %v1144
        %v1281 = vunpack.c.l.b16 %v1145
        %v1282 = vunpack.c.h.b16 %v1145
        %v1283 = vunpack.c.l.b16 %v1146
        %v1284 = vunpack.c.h.b16 %v1146
        %v1285 = vunpack.c.l.b16 %v1147
        %v1286 = vunpack.c.h.b16 %v1147
        %v1287 = vunpack.c.l.b16 %v1148
        %v1288 = vunpack.c.h.b16 %v1148
        %v1289 = vunpack.c.l.b16 %v1149
        %v1290 = vunpack.c.h.b16 %v1149
        %v1291 = vunpack.c.l.b16 %v1150
        %v1292 = vunpack.c.h.b16 %v1150
        %v1293 = vunpack.c.l.b16 %v1151
        %v1294 = vunpack.c.h.b16 %v1151
        %v1295 = vunpack.c.l.b16 %v1152
        %v1296 = vunpack.c.h.b16 %v1152
        %v1297 = vunpack.c.l.b16 %v1153
        %v1298 = vunpack.c.h.b16 %v1153
        %v1299 = vunpack.c.l.b16 %v1154
        %v1300 = vunpack.c.h.b16 %v1154
        %v1301 = vunpack.c.l.b16 %v1155
        %v1302 = vunpack.c.h.b16 %v1155
        %v1303 = vunpack.c.l.b16 %v1156
        %v1304 = vunpack.c.h.b16 %v1156
        %v1305 = vunpack.c.l.b16 %v1157
        %v1306 = vunpack.c.h.b16 %v1157
        %v1307 = vunpack.c.l.b16 %v1158
        %v1308 = vunpack.c.h.b16 %v1158
        %v1309 = vunpack.c.l.b16 %v1159
        %v1310 = vunpack.c.h.b16 %v1159
        %v1311 = vunpack.c.l.b16 %v1160
        %v1312 = vunpack.c.h.b16 %v1160
        %v1313 = vunpack.c.l.b16 %v1161
        %v1314 = vunpack.c.h.b16 %v1161
        %v1315 = vunpack.c.l.b16 %v1162
        %v1316 = vunpack.c.h.b16 %v1162
        %v1317 = vunpack.c.l.b16 %v1163
        %v1318 = vunpack.c.h.b16 %v1163
        %v1319 = vunpack.c.l.b16 %v1164
        %v1320 = vunpack.c.h.b16 %v1164
        %v1321 = vunpack.c.l.b16 %v1165
        %v1322 = vunpack.c.h.b16 %v1165
        %v1323 = vunpack.c.l.b16 %v1166
        %v1324 = vunpack.c.h.b16 %v1166
        %v1325 = vunpack.c.l.b16 %v1167
        %v1326 = vunpack.c.h.b16 %v1167
        %v1327 = vunpack.c.l.b16 %v1168
        %v1328 = vunpack.c.h.b16 %v1168
        %v1329 = vunpack.c.l.b16 %v1169
        %v1330 = vunpack.c.h.b16 %v1169
        %v1331 = vunpack.c.l.b16 %v1170
        %v1332 = vunpack.c.h.b16 %v1170
        %v1333 = vunpack.c.l.b16 %v1171
        %v1334 = vunpack.c.h.b16 %v1171
        %v1335 = vunpack.c.l.b16 %v1172
        %v1336 = vunpack.c.h.b16 %v1172
        %v1337 = vunpack.c.l.b16 %v1173
        %v1338 = vunpack.c.h.b16 %v1173
        %v1339 = vunpack.c.l.b16 %v1174
        %v1340 = vunpack.c.h.b16 %v1174
        %v1341 = vunpack.c.l.b16 %v1175
        %v1342 = vunpack.c.h.b16 %v1175
        %v1343 = vunpack.c.l.b16 %v1176
        %v1344 = vunpack.c.h.b16 %v1176
        %v1345 = vunpack.c.l.b16 %v1177
        %v1346 = vunpack.c.h.b16 %v1177
        %v1347 = vunpack.c.l.b16 %v1178
        %v1348 = vunpack.c.h.b16 %v1178
        %v1349 = vunpack.c.l.b16 %v1179
        %v1350 = vunpack.c.h.b16 %v1179
        %v1351 = vpack.c.b16 %v1247, %v1245
        %v1352 = vpack.c.b16 %v1248, %v1246
        %v1353 = vpack.c.b16 %v1251, %v1249
        %v1354 = vpack.c.b16 %v1252, %v1250
        %v1355 = vpack.c.b16 %v1255, %v1253
        %v1356 = vpack.c.b16 %v1256, %v1254
        %v1357 = vpack.c.b16 %v1259, %v1257
        %v1358 = vpack.c.b16 %v1260, %v1258
        %v1359 = vpack.c.b16 %v1263, %v1261
        %v1360 = vpack.c.b16 %v1264, %v1262
        %v1361 = vpack.c.b16 %v1267, %v1265
        %v1362 = vpack.c.b16 %v1268, %v1266
        %v1363 = vpack.c.b16 %v1271, %v1269
        %v1364 = vpack.c.b16 %v1272, %v1270
        %v1365 = vpack.c.b16 %v1275, %v1273
        %v1366 = vpack.c.b16 %v1276, %v1274
        %v1367 = vpack.c.b16 %v1279, %v1277
        %v1368 = vpack.c.b16 %v1280, %v1278
        %v1369 = vpack.c.b16 %v1283, %v1281
        %v1370 = vpack.c.b16 %v1284, %v1282
        %v1371 = vpack.c.b16 %v1287, %v1285
        %v1372 = vpack.c.b16 %v1288, %v1286
        %v1373 = vpack.c.b16 %v1291, %v1289
        %v1374 = vpack.c.b16 %v1292, %v1290
        %v1375 = vpack.c.b16 %v1295, %v1293
        %v1376 = vpack.c.b16 %v1296, %v1294
        %v1377 = vpack.c.b16 %v1299, %v1297
        %v1378 = vpack.c.b16 %v1300, %v1298
        %v1379 = vpack.c.b16 %v1303, %v1301
        %v1380 = vpack.c.b16 %v1304, %v1302
        %v1381 = vpack.c.b16 %v1307, %v1305
        %v1382 = vpack.c.b16 %v1308, %v1306
        %v1383 = vpack.c.b16 %v1311, %v1309
        %v1384 = vpack.c.b16 %v1312, %v1310
        %v1385 = vpack.c.b16 %v1315, %v1313
        %v1386 = vpack.c.b16 %v1316, %v1314
        %v1387 = vpack.c.b16 %v1319, %v1317
        %v1388 = vpack.c.b16 %v1320, %v1318
        %v1389 = vpack.c.b16 %v1323, %v1321
        %v1390 = vpack.c.b16 %v1324, %v1322
        %v1391 = vpack.c.b16 %v1327, %v1325
        %v1392 = vpack.c.b16 %v1328, %v1326
        %v1393 = vpack.c.b16 %v1331, %v1329
        %v1394 = vpack.c.b16 %v1332, %v1330
        %v1395 = vpack.c.b16 %v1335, %v1333
        %v1396 = vpack.c.b16 %v1336, %v1334
        %v1397 = vpack.c.b16 %v1339, %v1337
        %v1398 = vpack.c.b16 %v1340, %v1338
        %v1399 = vpack.c.b16 %v1343, %v1341
        %v1400 = vpack.c.b16 %v1344, %v1342
        %v1401 = vpack.c.b16 %v1347, %v1345
        %v1402 = vpack.c.b16 %v1348, %v1346
        %v1403 = vpack.c.b16 %v1349, %v1349
        %v1404 = vpack.c.b16 %v1350, %v1350
        %vm1457 = vcmask 293888
        %v1459 = vsel %vm1457, %v1126, 0
        %vm1461 = vcmask 1041408
        %v1463 = vsel %vm1461, %v1403, 0
        %v1466 = vsel %vm1461, %v1404, 0
        %1468 = vmatprep.subr.bf16.mxu0 %v1352
        %1469 = vmatpush1.bf16.msra.mxu0 %v1351
        %1470 = vmatprep.subr.bf16.mxu0 %v1354
        %1471 = vmatpush1.bf16.msra.mxu0 %v1353
        %1472 = vmatprep.subr.bf16.mxu0 %v1356
        %1473 = vmatpush1.bf16.msra.mxu0 %v1355
        %1474 = vmatprep.subr.bf16.mxu0 %v1358
        %1475 = vmatpush1.bf16.msra.mxu0 %v1357
        %1476 = vmatprep.subr.bf16.mxu0 %v1360
        %1477 = vmatpush1.bf16.msra.mxu0 %v1359
        %1478 = vmatprep.subr.bf16.mxu0 %v1362
        %1479 = vmatpush1.bf16.msra.mxu0 %v1361
        %1480 = vmatprep.subr.bf16.mxu0 %v1364
        %1481 = vmatpush1.bf16.msra.mxu0 %v1363
        %1482 = vmatprep.subr.bf16.mxu0 %v1366
        %1483 = vmatpush1.bf16.msra.mxu0 %v1365
        %1484 = vmatprep.subr.bf16.mxu0 %v1368
        %1485 = vmatpush1.bf16.msra.mxu0 %v1367
        %1486 = vmatprep.subr.bf16.mxu0 %v1370
        %1487 = vmatpush1.bf16.msra.mxu0 %v1369
        %1488 = vmatprep.subr.bf16.mxu0 %v1372
        %1489 = vmatpush1.bf16.msra.mxu0 %v1371
        %1490 = vmatprep.subr.bf16.mxu0 %v1374
        %1491 = vmatpush1.bf16.msra.mxu0 %v1373
        %1492 = vmatprep.subr.bf16.mxu0 %v1376
        %1493 = vmatpush1.bf16.msra.mxu0 %v1375
        %1494 = vmatprep.subr.bf16.mxu0 %v1378
        %1495 = vmatpush1.bf16.msra.mxu0 %v1377
        %1496 = vmatprep.subr.bf16.mxu0 %v1380
        %1497 = vmatpush1.bf16.msra.mxu0 %v1379
        %1498 = vmatprep.subr.bf16.mxu0 %v1382
        %1499 = vmatpush1.bf16.msra.mxu0 %v1381
        %1500 = vmatprep.mubr.bf16.mxu0 %v1124
        %1501 = vmatmul.mubr.bf16.gmra.mrb[0].mxu0 %v1123
        %v1502 = vpop.f32.mrb[0].mxu0
        %v1503 = vadd.f32 %v1185, %v1502
        %v1504 = vpop.f32.mrb[0].mxu0
        %v1505 = vadd.f32 %v1189, %v1504
        %v1506 = vpop.f32.mrb[0].mxu0
        %v1507 = vadd.f32 %v1185, %v1506
        %v1508 = vpop.f32.mrb[0].mxu0
        %v1509 = vadd.f32 %v1189, %v1508
        %1510 = vdwg.mxu0
        %1511 = vmatprep.subr.bf16.mxu0 %v1384
        %1512 = vmatpush1.bf16.msra.mxu0 %v1383
        %1513 = vmatprep.subr.bf16.mxu0 %v1386
        %1514 = vmatpush1.bf16.msra.mxu0 %v1385
        %1515 = vmatprep.subr.bf16.mxu0 %v1388
        %1516 = vmatpush1.bf16.msra.mxu0 %v1387
        %1517 = vmatprep.subr.bf16.mxu0 %v1390
        %1518 = vmatpush1.bf16.msra.mxu0 %v1389
        %1519 = vmatprep.subr.bf16.mxu0 %v1392
        %1520 = vmatpush1.bf16.msra.mxu0 %v1391
        %1521 = vmatprep.subr.bf16.mxu0 %v1394
        %1522 = vmatpush1.bf16.msra.mxu0 %v1393
        %1523 = vmatprep.subr.bf16.mxu0 %v1396
        %1524 = vmatpush1.bf16.msra.mxu0 %v1395
        %1525 = vmatprep.subr.bf16.mxu0 %v1398
        %1526 = vmatpush1.bf16.msra.mxu0 %v1397
        %1527 = vmatprep.subr.bf16.mxu0 %v1400
        %1528 = vmatpush1.bf16.msra.mxu0 %v1399
        %1529 = vmatprep.subr.bf16.mxu0 %v1402
        %1530 = vmatpush1.bf16.msra.mxu0 %v1401
        %1531 = vmatprep.subr.bf16.mxu0 %v1466
        %1532 = vmatpush1.bf16.msra.mxu0 %v1463
        %1533 = vmatprep.subr.bf16.mxu0 0
        %1534 = vmatpush1.bf16.msra.mxu0 0
        %1535 = vmatprep.subr.bf16.mxu0 0
        %1536 = vmatpush1.bf16.msra.mxu0 0
        %1537 = vmatprep.subr.bf16.mxu0 0
        %1538 = vmatpush1.bf16.msra.mxu0 0
        %1539 = vmatprep.subr.bf16.mxu0 0
        %1540 = vmatpush1.bf16.msra.mxu0 0
        %1541 = vmatprep.subr.bf16.mxu0 0
        %1542 = vmatpush1.bf16.msra.mxu0 0
        %1543 = vmatprep.mubr.bf16.mxu0 %v1459
        %1544 = vmatmul.mubr.bf16.gmra.mrb[0].mxu0 %v1125
        %v1545 = vpop.f32.mrb[0].mxu0
        %v1546 = vadd.f32 %v1503, %v1545
        %v1547 = vpop.f32.mrb[0].mxu0
        %v1548 = vadd.f32 %v1505, %v1547
        %v1549 = vpop.f32.mrb[0].mxu0
        %v1550 = vadd.f32 %v1507, %v1549
        %v1551 = vpop.f32.mrb[0].mxu0
        %v1552 = vadd.f32 %v1509, %v1551
        %1553 = vdwg.mxu0
        %v1554 = vmax.f32 %v1546, 0.0
        %v1555 = vmax.f32 %v1548, 0.0
        %v1556 = vmax.f32 %v1550, 0.0
        %v1557 = vmax.f32 %v1552, 0.0
        %1562 = vrot.lane.b32.xlu0 %v1554, 127
        %v1563 = vpop.permute.xlu0 %1562
        %1564 = vrot.lane.b32.xlu0 %v1555, 127
        %v1565 = vpop.permute.xlu0 %1564
        %1566 = vrot.lane.b32.xlu0 %v1556, 127
        %v1567 = vpop.permute.xlu0 %1566
        %1568 = vrot.lane.b32.xlu0 %v1557, 127
        %v1569 = vpop.permute.xlu0 %1568
        %v1570 = vsel %vm815, %v1563, %v1565
        %v1571 = vsel %vm815, %v1567, %v1569
        %v1576 = vmax.f32 %v1554, %v1570
        %v1577 = vmax.f32 %v1555, %v1565
        %v1578 = vmax.f32 %v1556, %v1571
        %v1579 = vmax.f32 %v1557, %v1569
        %v1584 = vrot.slane %v1576, 1
        %v1585 = vrot.slane %v1578, 1
        %v1586 = vsel %vm501, %v1584, %v1585
        %v1587 = vrot.slane %v1577, 1
        %v1588 = vrot.slane %v1579, 1
        %v1589 = vsel %vm501, %v1587, %v1588
        %v1594 = vmax.f32 %v1576, %v1586
        %v1595 = vmax.f32 %v1577, %v1589
        %v1596 = vmax.f32 %v1578, %v1585
        %v1597 = vmax.f32 %v1579, %v1588
        %v1598 = vld [vmem:[%s7] sm:$0x1f]
        %vm1599 = vcmask 72704
        %v1601 = vsel %vm1599, %v1598, 0
        %vm1603 = vcmask 1040384
        %v1605 = vsel %vm1603, %v1596, 0
        %v1608 = vsel %vm1603, %v1597, 0
        %1610 = vmatprep.subr.mxu0 %v1595
        %1611 = vmatpush1.msra.mxu0 %v1594
        %1612 = vmatprep.subr.mxu0 %v1608
        %1613 = vmatpush1.msra.mxu0 %v1605
        %1614 = vmatprep.subr.mxu0 0.0
        %1615 = vmatpush1.msra.mxu0 0.0
        %1616 = vmatprep.subr.mxu0 0.0
        %1617 = vmatpush1.msra.mxu0 0.0
        %1618 = vmatprep.subr.mxu0 0.0
        %1619 = vmatpush1.msra.mxu0 0.0
        %1620 = vmatprep.subr.mxu0 0.0
        %1621 = vmatpush1.msra.mxu0 0.0
        %1622 = vmatprep.subr.mxu0 0.0
        %1623 = vmatpush1.msra.mxu0 0.0
        %1624 = vmatprep.subr.mxu0 0.0
        %1625 = vmatpush1.msra.mxu0 0.0
        %1626 = vmatprep.subr.mxu0 0.0
        %1627 = vmatpush1.msra.mxu0 0.0
        %1628 = vmatprep.subr.mxu0 0.0
        %1629 = vmatpush1.msra.mxu0 0.0
        %1630 = vmatprep.subr.mxu0 0.0
        %1631 = vmatpush1.msra.mxu0 0.0
        %1632 = vmatprep.subr.mxu0 0.0
        %1633 = vmatpush1.msra.mxu0 0.0
        %1634 = vmatprep.subr.mxu0 0.0
        %1635 = vmatpush1.msra.mxu0 0.0
        %1636 = vmatprep.subr.mxu0 0.0
        %1637 = vmatpush1.msra.mxu0 0.0
        %1638 = vmatprep.subr.mxu0 0.0
        %1639 = vmatpush1.msra.mxu0 0.0
        %1640 = vmatprep.subr.mxu0 0.0
        %1641 = vmatpush1.msra.mxu0 0.0
        %1642 = vmatprep.subr.mxu0 0.0
        %1643 = vmatpush1.msra.mxu0 0.0
        %1644 = vmatprep.subr.mxu0 0.0
        %1645 = vmatpush1.msra.mxu0 0.0
        %1646 = vmatprep.subr.mxu0 0.0
        %1647 = vmatpush1.msra.mxu0 0.0
        %1648 = vmatprep.subr.mxu0 0.0
        %1649 = vmatpush1.msra.mxu0 0.0
        %1650 = vmatprep.subr.mxu0 0.0
        %1651 = vmatpush1.msra.mxu0 0.0
        %1652 = vmatprep.subr.mxu0 0.0
        %1653 = vmatpush1.msra.mxu0 0.0
        %1654 = vmatprep.subr.mxu0 0.0
        %1655 = vmatpush1.msra.mxu0 0.0
        %1656 = vmatprep.subr.mxu0 0.0
        %1657 = vmatpush1.msra.mxu0 0.0
        %1658 = vmatprep.subr.mxu0 0.0
        %1659 = vmatpush1.msra.mxu0 0.0
        %1660 = vmatprep.subr.mxu0 0.0
        %1661 = vmatpush1.msra.mxu0 0.0
        %1662 = vmatprep.subr.mxu0 0.0
        %1663 = vmatpush1.msra.mxu0 0.0
        %1664 = vmatprep.subr.mxu0 0.0
        %1665 = vmatpush1.msra.mxu0 0.0
        %1666 = vmatprep.subr.mxu0 0.0
        %1667 = vmatpush1.msra.mxu0 0.0
        %1668 = vmatprep.subr.mxu0 0.0
        %1669 = vmatpush1.msra.mxu0 0.0
        %1670 = vmatprep.subr.mxu0 0.0
        %1671 = vmatpush1.msra.mxu0 0.0
        %1672 = vmatprep.subr.mxu0 0.0
        %1673 = vmatpush1.msra.mxu0 0.0
        %1674 = vmatprep.mubr.f32.mxu0 0.0
        %1675 = vmatmul.mubr.f32.gmra.mrb[0].mxu0 %v1601
        %v1676 = vpop.f32.mrb[0].mxu0
        %v1677 = vadd.f32 0.0, %v1676
        %v1678 = vpop.f32.mrb[0].mxu0
        %v1679 = vadd.f32 0.0, %v1678
        %1680 = vdwg.mxu0
        %v1681 = vld [vmem:[%s8] sm:$0xff]
        %v1682 = vld [vmem:[%s8 + $0x8] sm:$0xff]
        %v1683 = vld [vmem:[%s8 + $0x10] sm:$0xff]
        %v1684 = vld [vmem:[%s8 + $0x18] sm:$0xff]
        %v1685 = vld [vmem:[%s8 + $0x20] sm:$0xff]
        %v1686 = vld [vmem:[%s8 + $0x28] sm:$0xff]
        %v1687 = vld [vmem:[%s8 + $0x30] sm:$0xff]
        %v1688 = vld [vmem:[%s8 + $0x38] sm:$0xff]
        %v1689 = vld [vmem:[%s8 + $0x40] sm:$0xff]
        %v1690 = vld [vmem:[%s8 + $0x48] sm:$0xff]
        %v1691 = vld [vmem:[%s8 + $0x50] sm:$0xff]
        %v1692 = vld [vmem:[%s8 + $0x58] sm:$0xff]
        %v1693 = vld [vmem:[%s8 + $0x60] sm:$0xff]
        %v1694 = vld [vmem:[%s8 + $0x68] sm:$0xff]
        %v1695 = vld [vmem:[%s8 + $0x70] sm:$0xff]
        %v1696 = vld [vmem:[%s8 + $0x78] sm:$0xff]
        %v1697 = vld [vmem:[%s8 + $0x80] sm:$0xff]
        %v1698 = vld [vmem:[%s8 + $0x88] sm:$0xff]
        %v1699 = vld [vmem:[%s8 + $0x90] sm:$0xff]
        %v1700 = vld [vmem:[%s8 + $0x98] sm:$0x7f]
        %vm1701 = vcmask 252928
        %v1703 = vsel %vm1701, %v1679, 0
        %v1706 = vsel %vm501, %v1700, 0
        %1708 = vmatprep.subr.mxu0 0.0
        %1709 = vmatpush1.msra.mxu0 %v1681
        %1710 = vmatprep.subr.mxu0 0.0
        %1711 = vmatpush1.msra.mxu0 %v1682
        %1712 = vmatprep.subr.mxu0 0.0
        %1713 = vmatpush1.msra.mxu0 %v1683
        %1714 = vmatprep.subr.mxu0 0.0
        %1715 = vmatpush1.msra.mxu0 %v1684
        %1716 = vmatprep.subr.mxu0 0.0
        %1717 = vmatpush1.msra.mxu0 %v1685
        %1718 = vmatprep.subr.mxu0 0.0
        %1719 = vmatpush1.msra.mxu0 %v1686
        %1720 = vmatprep.subr.mxu0 0.0
        %1721 = vmatpush1.msra.mxu0 %v1687
        %1722 = vmatprep.subr.mxu0 0.0
        %1723 = vmatpush1.msra.mxu0 %v1688
        %1724 = vmatprep.subr.mxu0 0.0
        %1725 = vmatpush1.msra.mxu0 %v1689
        %1726 = vmatprep.subr.mxu0 0.0
        %1727 = vmatpush1.msra.mxu0 %v1690
        %1728 = vmatprep.subr.mxu0 0.0
        %1729 = vmatpush1.msra.mxu0 %v1691
        %1730 = vmatprep.subr.mxu0 0.0
        %1731 = vmatpush1.msra.mxu0 %v1692
        %1732 = vmatprep.subr.mxu0 0.0
        %1733 = vmatpush1.msra.mxu0 %v1693
        %1734 = vmatprep.subr.mxu0 0.0
        %1735 = vmatpush1.msra.mxu0 %v1694
        %1736 = vmatprep.subr.mxu0 0.0
        %1737 = vmatpush1.msra.mxu0 %v1695
        %1738 = vmatprep.subr.mxu0 0.0
        %1739 = vmatpush1.msra.mxu0 %v1696
        %1740 = vmatprep.subr.mxu0 0.0
        %1741 = vmatpush1.msra.mxu0 %v1697
        %1742 = vmatprep.subr.mxu0 0.0
        %1743 = vmatpush1.msra.mxu0 %v1698
        %1744 = vmatprep.subr.mxu0 0.0
        %1745 = vmatpush1.msra.mxu0 %v1699
        %1746 = vmatprep.subr.mxu0 0.0
        %1747 = vmatpush1.msra.mxu0 %v1706
        %1748 = vmatprep.subr.mxu0 0.0
        %1749 = vmatpush1.msra.mxu0 0.0
        %1750 = vmatprep.subr.mxu0 0.0
        %1751 = vmatpush1.msra.mxu0 0.0
        %1752 = vmatprep.subr.mxu0 0.0
        %1753 = vmatpush1.msra.mxu0 0.0
        %1754 = vmatprep.subr.mxu0 0.0
        %1755 = vmatpush1.msra.mxu0 0.0
        %1756 = vmatprep.subr.mxu0 0.0
        %1757 = vmatpush1.msra.mxu0 0.0
        %1758 = vmatprep.subr.mxu0 0.0
        %1759 = vmatpush1.msra.mxu0 0.0
        %1760 = vmatprep.subr.mxu0 0.0
        %1761 = vmatpush1.msra.mxu0 0.0
        %1762 = vmatprep.subr.mxu0 0.0
        %1763 = vmatpush1.msra.mxu0 0.0
        %1764 = vmatprep.subr.mxu0 0.0
        %1765 = vmatpush1.msra.mxu0 0.0
        %1766 = vmatprep.subr.mxu0 0.0
        %1767 = vmatpush1.msra.mxu0 0.0
        %1768 = vmatprep.subr.mxu0 0.0
        %1769 = vmatpush1.msra.mxu0 0.0
        %1770 = vmatprep.subr.mxu0 0.0
        %1771 = vmatpush1.msra.mxu0 0.0
        %1772 = vmatprep.mubr.f32.mxu0 %v1703
        %1773 = vmatmul.mubr.f32.gmra.mrb[0].mxu0 %v1677
        %v1774 = vpop.f32.mrb[0].mxu0
        %v1775 = vadd.f32 0.0, %v1774
        %v1776 = vpop.f32.mrb[0].mxu0
        %1777 = vdwg.mxu0
        %v1779 = vrot.slane %v1775, 1
        %1780 = vrot.lane.b32.xlu0 %v1779, 80
        %v1781 = vpop.permute.xlu0 %1780
        %v1783 = vrot.slane %v1775, 2
        %1784 = vrot.lane.b32.xlu0 %v1783, 32
        %v1785 = vpop.permute.xlu0 %1784
        %v1787 = vrot.slane %v1775, 3
        %1788 = vrot.lane.b32.xlu0 %v1787, 112
        %v1789 = vpop.permute.xlu0 %1788
        %v1791 = vrot.slane %v1775, 4
        %1792 = vrot.lane.b32.xlu0 %v1791, 64
        %v1793 = vpop.permute.xlu0 %1792
        %v1795 = vsel %vm1120, %v1775, %v1781
        %v1796 = vsel %vm573, %v1781, %v1785
        %vm1797 = vcmask 916480
        %v1798 = vsel %vm1797, %v1796, %v1789
        %v1799 = vsel %vm578, %v1789, %v1793
        %v1800 = vpack.c.bf16 %v1795, %v1795
        %v1801 = vpack.c.bf16 %v1798, %v1798
        %v1802 = vpack.c.bf16 %v1799, %v1799
        %v1803 = vpack.c.bf16 %v1793, %v1793
        %v1804 = vld [vmem:[%s9] sm:$0xf]
        %v1805 = vld [vmem:[%s9 + $0x4] sm:$0xf]
        %v1806 = vld [vmem:[%s9 + $0x8] sm:$0xf]
        %v1807 = vld [vmem:[%s9 + $0xc] sm:$0xf]
        %v1808 = vld [vmem:[%s9 + $0x10] sm:$0xf]
        %v1809 = vld [vmem:[%s9 + $0x14] sm:$0xf]
        %v1810 = vld [vmem:[%s9 + $0x18] sm:$0xf]
        %v1811 = vld [vmem:[%s9 + $0x1c] sm:$0xf]
        %v1812 = vld [vmem:[%s9 + $0x20] sm:$0xf]
        %v1813 = vld [vmem:[%s9 + $0x24] sm:$0xf]
        %v1814 = vld [vmem:[%s9 + $0x28] sm:$0xf]
        %v1815 = vld [vmem:[%s9 + $0x2c] sm:$0xf]
        %v1816 = vld [vmem:[%s9 + $0x30] sm:$0xf]
        %v1817 = vld [vmem:[%s9 + $0x34] sm:$0xf]
        %v1818 = vld [vmem:[%s9 + $0x38] sm:$0xf]
        %v1819 = vld [vmem:[%s9 + $0x3c] sm:$0xf]
        %v1820 = vld [vmem:[%s9 + $0x40] sm:$0xf]
        %v1821 = vld [vmem:[%s9 + $0x44] sm:$0xf]
        %v1822 = vld [vmem:[%s9 + $0x48] sm:$0xf]
        %v1823 = vld [vmem:[%s9 + $0x4c] sm:$0xf]
        %v1824 = vld [vmem:[%s9 + $0x50] sm:$0xf]
        %v1825 = vld [vmem:[%s9 + $0x54] sm:$0xf]
        %v1826 = vld [vmem:[%s9 + $0x58] sm:$0xf]
        %v1827 = vld [vmem:[%s9 + $0x5c] sm:$0xf]
        %v1828 = vld [vmem:[%s9 + $0x60] sm:$0xf]
        %v1829 = vld [vmem:[%s9 + $0x64] sm:$0xf]
        %v1830 = vld [vmem:[%s9 + $0x68] sm:$0xf]
        %v1831 = vld [vmem:[%s9 + $0x6c] sm:$0xf]
        %v1832 = vld [vmem:[%s9 + $0x70] sm:$0xf]
        %v1833 = vld [vmem:[%s9 + $0x74] sm:$0xf]
        %v1834 = vld [vmem:[%s9 + $0x78] sm:$0xf]
        %v1835 = vld [vmem:[%s9 + $0x7c] sm:$0xf]
        %v1836 = vld [vmem:[%s9 + $0x80] sm:$0xf]
        %v1837 = vld [vmem:[%s9 + $0x84] sm:$0xf]
        %v1838 = vld [vmem:[%s9 + $0x88] sm:$0xf]
        %v1839 = vld [vmem:[%s9 + $0x8c] sm:$0xf]
        %v1840 = vld [vmem:[%s9 + $0x90] sm:$0xf]
        %v1841 = vld [vmem:[%s9 + $0x94] sm:$0xf]
        %v1842 = vld [vmem:[%s9 + $0x98] sm:$0xf]
        %v1843 = vld [vmem:[%s9 + $0x9c] sm:$0xf]
        %v1844 = vld [vmem:[%s9 + $0xa0] sm:$0xf]
        %v1845 = vld [vmem:[%s9 + $0xa4] sm:$0xf]
        %v1846 = vld [vmem:[%s9 + $0xa8] sm:$0xf]
        %v1847 = vld [vmem:[%s9 + $0xac] sm:$0xf]
        %v1848 = vld [vmem:[%s9 + $0xb0] sm:$0xf]
        %v1849 = vld [vmem:[%s9 + $0xb4] sm:$0xf]
        %v1850 = vld [vmem:[%s9 + $0xb8] sm:$0xf]
        %v1851 = vld [vmem:[%s9 + $0xbc] sm:$0xf]
        %v1852 = vld [vmem:[%s9 + $0xc0] sm:$0xf]
        %v1853 = vld [vmem:[%s9 + $0xc4] sm:$0xf]
        %v1854 = vld [vmem:[%s10] sm:$0x1]
        %v1905 = vunpack.c.l.b16 %v1804
        %v1906 = vunpack.c.l.b16 %v1805
        %v1907 = vunpack.c.l.b16 %v1806
        %v1908 = vunpack.c.l.b16 %v1807
        %v1909 = vunpack.c.l.b16 %v1808
        %v1910 = vunpack.c.l.b16 %v1809
        %v1911 = vunpack.c.l.b16 %v1810
        %v1912 = vunpack.c.l.b16 %v1811
        %v1913 = vunpack.c.l.b16 %v1812
        %v1914 = vunpack.c.l.b16 %v1813
        %v1915 = vunpack.c.l.b16 %v1814
        %v1916 = vunpack.c.l.b16 %v1815
        %v1917 = vunpack.c.l.b16 %v1816
        %v1918 = vunpack.c.l.b16 %v1817
        %v1919 = vunpack.c.l.b16 %v1818
        %v1920 = vunpack.c.l.b16 %v1819
        %v1921 = vunpack.c.l.b16 %v1820
        %v1922 = vunpack.c.l.b16 %v1821
        %v1923 = vunpack.c.l.b16 %v1822
        %v1924 = vunpack.c.l.b16 %v1823
        %v1925 = vunpack.c.l.b16 %v1824
        %v1926 = vunpack.c.l.b16 %v1825
        %v1927 = vunpack.c.l.b16 %v1826
        %v1928 = vunpack.c.l.b16 %v1827
        %v1929 = vunpack.c.l.b16 %v1828
        %v1930 = vunpack.c.l.b16 %v1829
        %v1931 = vunpack.c.l.b16 %v1830
        %v1932 = vunpack.c.l.b16 %v1831
        %v1933 = vunpack.c.l.b16 %v1832
        %v1934 = vunpack.c.l.b16 %v1833
        %v1935 = vunpack.c.l.b16 %v1834
        %v1936 = vunpack.c.l.b16 %v1835
        %v1937 = vunpack.c.l.b16 %v1836
        %v1938 = vunpack.c.l.b16 %v1837
        %v1939 = vunpack.c.l.b16 %v1838
        %v1940 = vunpack.c.l.b16 %v1839
        %v1941 = vunpack.c.l.b16 %v1840
        %v1942 = vunpack.c.l.b16 %v1841
        %v1943 = vunpack.c.l.b16 %v1842
        %v1944 = vunpack.c.l.b16 %v1843
        %v1945 = vunpack.c.l.b16 %v1844
        %v1946 = vunpack.c.l.b16 %v1845
        %v1947 = vunpack.c.l.b16 %v1846
        %v1948 = vunpack.c.l.b16 %v1847
        %v1949 = vunpack.c.l.b16 %v1848
        %v1950 = vunpack.c.l.b16 %v1849
        %v1951 = vunpack.c.l.b16 %v1850
        %v1952 = vunpack.c.l.b16 %v1851
        %v1953 = vunpack.c.l.b16 %v1852
        %v1954 = vunpack.c.l.b16 %v1853
        %v1955 = vpack.c.b16 %v1906, %v1905
        %v1956 = vpack.c.b16 %v1908, %v1907
        %v1957 = vpack.c.b16 %v1910, %v1909
        %v1958 = vpack.c.b16 %v1912, %v1911
        %v1959 = vpack.c.b16 %v1914, %v1913
        %v1960 = vpack.c.b16 %v1916, %v1915
        %v1961 = vpack.c.b16 %v1918, %v1917
        %v1962 = vpack.c.b16 %v1920, %v1919
        %v1963 = vpack.c.b16 %v1922, %v1921
        %v1964 = vpack.c.b16 %v1924, %v1923
        %v1965 = vpack.c.b16 %v1926, %v1925
        %v1966 = vpack.c.b16 %v1928, %v1927
        %v1967 = vpack.c.b16 %v1930, %v1929
        %v1968 = vpack.c.b16 %v1932, %v1931
        %v1969 = vpack.c.b16 %v1934, %v1933
        %v1970 = vpack.c.b16 %v1936, %v1935
        %v1971 = vpack.c.b16 %v1938, %v1937
        %v1972 = vpack.c.b16 %v1940, %v1939
        %v1973 = vpack.c.b16 %v1942, %v1941
        %v1974 = vpack.c.b16 %v1944, %v1943
        %v1975 = vpack.c.b16 %v1946, %v1945
        %v1976 = vpack.c.b16 %v1948, %v1947
        %v1977 = vpack.c.b16 %v1950, %v1949
        %v1978 = vpack.c.b16 %v1952, %v1951
        %v1979 = vpack.c.b16 %v1954, %v1953
        %vm2005 = vcmask 130048
        %v2007 = vsel %vm2005, %v1803, 0
        %2009 = vmatprep.subr.bf16.mxu0 0
        %2010 = vmatpush1.bf16.msra.mxu0 %v1955
        %2011 = vmatprep.subr.bf16.mxu0 0
        %2012 = vmatpush1.bf16.msra.mxu0 %v1956
        %2013 = vmatprep.subr.bf16.mxu0 0
        %2014 = vmatpush1.bf16.msra.mxu0 %v1957
        %2015 = vmatprep.subr.bf16.mxu0 0
        %2016 = vmatpush1.bf16.msra.mxu0 %v1958
        %2017 = vmatprep.subr.bf16.mxu0 0
        %2018 = vmatpush1.bf16.msra.mxu0 %v1959
        %2019 = vmatprep.subr.bf16.mxu0 0
        %2020 = vmatpush1.bf16.msra.mxu0 %v1960
        %2021 = vmatprep.subr.bf16.mxu0 0
        %2022 = vmatpush1.bf16.msra.mxu0 %v1961
        %2023 = vmatprep.subr.bf16.mxu0 0
        %2024 = vmatpush1.bf16.msra.mxu0 %v1962
        %2025 = vmatprep.subr.bf16.mxu0 0
        %2026 = vmatpush1.bf16.msra.mxu0 %v1963
        %2027 = vmatprep.subr.bf16.mxu0 0
        %2028 = vmatpush1.bf16.msra.mxu0 %v1964
        %2029 = vmatprep.subr.bf16.mxu0 0
        %2030 = vmatpush1.bf16.msra.mxu0 %v1965
        %2031 = vmatprep.subr.bf16.mxu0 0
        %2032 = vmatpush1.bf16.msra.mxu0 %v1966
        %2033 = vmatprep.subr.bf16.mxu0 0
        %2034 = vmatpush1.bf16.msra.mxu0 %v1967
        %2035 = vmatprep.subr.bf16.mxu0 0
        %2036 = vmatpush1.bf16.msra.mxu0 %v1968
        %2037 = vmatprep.subr.bf16.mxu0 0
        %2038 = vmatpush1.bf16.msra.mxu0 %v1969
        %2039 = vmatprep.subr.bf16.mxu0 0
        %2040 = vmatpush1.bf16.msra.mxu0 %v1970
        %2041 = vmatprep.mubr.bf16.mxu0 %v1801
        %2042 = vmatmul.mubr.bf16.gmra.mrb[0].mxu0 %v1800
        %v2043 = vpop.f32.mrb[0].mxu0
        %v2044 = vadd.f32 %v1854, %v2043
        %v2045 = vpop.f32.mrb[0].mxu0
        %v2046 = vpop.f32.mrb[0].mxu0
        %v2047 = vpop.f32.mrb[0].mxu0
        %2048 = vdwg.mxu0
        %2049 = vmatprep.subr.bf16.mxu0 0
        %2050 = vmatpush1.bf16.msra.mxu0 %v1971
        %2051 = vmatprep.subr.bf16.mxu0 0
        %2052 = vmatpush1.bf16.msra.mxu0 %v1972
        %2053 = vmatprep.subr.bf16.mxu0 0
        %2054 = vmatpush1.bf16.msra.mxu0 %v1973
        %2055 = vmatprep.subr.bf16.mxu0 0
        %2056 = vmatpush1.bf16.msra.mxu0 %v1974
        %2057 = vmatprep.subr.bf16.mxu0 0
        %2058 = vmatpush1.bf16.msra.mxu0 %v1975
        %2059 = vmatprep.subr.bf16.mxu0 0
        %2060 = vmatpush1.bf16.msra.mxu0 %v1976
        %2061 = vmatprep.subr.bf16.mxu0 0
        %2062 = vmatpush1.bf16.msra.mxu0 %v1977
        %2063 = vmatprep.subr.bf16.mxu0 0
        %2064 = vmatpush1.bf16.msra.mxu0 %v1978
        %2065 = vmatprep.subr.bf16.mxu0 0
        %2066 = vmatpush1.bf16.msra.mxu0 %v1979
        %2067 = vmatprep.subr.bf16.mxu0 0
        %2068 = vmatpush1.bf16.msra.mxu0 0
        %2069 = vmatprep.subr.bf16.mxu0 0
        %2070 = vmatpush1.bf16.msra.mxu0 0
        %2071 = vmatprep.subr.bf16.mxu0 0
        %2072 = vmatpush1.bf16.msra.mxu0 0
        %2073 = vmatprep.subr.bf16.mxu0 0
        %2074 = vmatpush1.bf16.msra.mxu0 0
        %2075 = vmatprep.subr.bf16.mxu0 0
        %2076 = vmatpush1.bf16.msra.mxu0 0
        %2077 = vmatprep.subr.bf16.mxu0 0
        %2078 = vmatpush1.bf16.msra.mxu0 0
        %2079 = vmatprep.subr.bf16.mxu0 0
        %2080 = vmatpush1.bf16.msra.mxu0 0
        %2081 = vmatprep.mubr.bf16.mxu0 %v2007
        %2082 = vmatmul.mubr.bf16.gmra.mrb[0].mxu0 %v1802
        %v2083 = vpop.f32.mrb[0].mxu0
        %v2084 = vadd.f32 %v2044, %v2083
        %v2085 = vpop.f32.mrb[0].mxu0
        %v2086 = vpop.f32.mrb[0].mxu0
        %v2087 = vpop.f32.mrb[0].mxu0
        %2088 = vdwg.mxu0
        %v2089 = vmax.f32 %v2084, 0.0
        %v2090 = vpack.c.bf16 %v2089, %v2089
        %v2091 = vld [vmem:[%s11] sm:$0xf]
        %v2092 = vld [vmem:[%s11 + $0x4] sm:$0xf]
        %v2093 = vld [vmem:[%s11 + $0x8] sm:$0xf]
        %v2094 = vld [vmem:[%s11 + $0xc] sm:$0xf]
        %v2095 = vld [vmem:[%s11 + $0x10] sm:$0xf]
        %v2096 = vld [vmem:[%s11 + $0x14] sm:$0xf]
        %v2097 = vld [vmem:[%s11 + $0x18] sm:$0xf]
        %v2098 = vld [vmem:[%s11 + $0x1c] sm:$0xf]
        %v2099 = vld [vmem:[%s11 + $0x20] sm:$0xf]
        %v2100 = vld [vmem:[%s11 + $0x24] sm:$0xf]
        %v2101 = vld [vmem:[%s11 + $0x28] sm:$0xf]
        %v2102 = vld [vmem:[%s11 + $0x2c] sm:$0xf]
        %v2103 = vld [vmem:[%s11 + $0x30] sm:$0xf]
        %v2104 = vld [vmem:[%s11 + $0x34] sm:$0xf]
        %v2105 = vld [vmem:[%s11 + $0x38] sm:$0xf]
        %v2106 = vld [vmem:[%s12] sm:$0x1]
        %v2122 = vunpack.c.l.b16 %v2091
        %v2123 = vunpack.c.l.b16 %v2092
        %v2124 = vunpack.c.l.b16 %v2093
        %v2125 = vunpack.c.l.b16 %v2094
        %v2126 = vunpack.c.l.b16 %v2095
        %v2127 = vunpack.c.l.b16 %v2096
        %v2128 = vunpack.c.l.b16 %v2097
        %v2129 = vunpack.c.l.b16 %v2098
        %v2130 = vunpack.c.l.b16 %v2099
        %v2131 = vunpack.c.l.b16 %v2100
        %v2132 = vunpack.c.l.b16 %v2101
        %v2133 = vunpack.c.l.b16 %v2102
        %v2134 = vunpack.c.l.b16 %v2103
        %v2135 = vunpack.c.l.b16 %v2104
        %v2136 = vunpack.c.l.b16 %v2105
        %v2137 = vpack.c.b16 %v2123, %v2122
        %v2138 = vpack.c.b16 %v2125, %v2124
        %v2139 = vpack.c.b16 %v2127, %v2126
        %v2140 = vpack.c.b16 %v2129, %v2128
        %v2141 = vpack.c.b16 %v2131, %v2130
        %v2142 = vpack.c.b16 %v2133, %v2132
        %v2143 = vpack.c.b16 %v2135, %v2134
        %v2144 = vpack.c.b16 %v2136, %v2136
        %vm2152 = vcmask 982016
        %v2154 = vsel %vm2152, %v2090, 0
        %v2157 = vsel %vm561, %v2144, 0
        %2159 = vmatprep.subr.bf16.mxu0 0
        %2160 = vmatpush1.bf16.msra.mxu0 %v2137
        %2161 = vmatprep.subr.bf16.mxu0 0
        %2162 = vmatpush1.bf16.msra.mxu0 %v2138
        %2163 = vmatprep.subr.bf16.mxu0 0
        %2164 = vmatpush1.bf16.msra.mxu0 %v2139
        %2165 = vmatprep.subr.bf16.mxu0 0
        %2166 = vmatpush1.bf16.msra.mxu0 %v2140
        %2167 = vmatprep.subr.bf16.mxu0 0
        %2168 = vmatpush1.bf16.msra.mxu0 %v2141
        %2169 = vmatprep.subr.bf16.mxu0 0
        %2170 = vmatpush1.bf16.msra.mxu0 %v2142
        %2171 = vmatprep.subr.bf16.mxu0 0
        %2172 = vmatpush1.bf16.msra.mxu0 %v2143
        %2173 = vmatprep.subr.bf16.mxu0 0
        %2174 = vmatpush1.bf16.msra.mxu0 %v2157
        %2175 = vmatprep.subr.bf16.mxu0 0
        %2176 = vmatpush1.bf16.msra.mxu0 0
        %2177 = vmatprep.subr.bf16.mxu0 0
        %2178 = vmatpush1.bf16.msra.mxu0 0
        %2179 = vmatprep.subr.bf16.mxu0 0
        %2180 = vmatpush1.bf16.msra.mxu0 0
        %2181 = vmatprep.subr.bf16.mxu0 0
        %2182 = vmatpush1.bf16.msra.mxu0 0
        %2183 = vmatprep.subr.bf16.mxu0 0
        %2184 = vmatpush1.bf16.msra.mxu0 0
        %2185 = vmatprep.subr.bf16.mxu0 0
        %2186 = vmatpush1.bf16.msra.mxu0 0
        %2187 = vmatprep.subr.bf16.mxu0 0
        %2188 = vmatpush1.bf16.msra.mxu0 0
        %2189 = vmatprep.subr.bf16.mxu0 0
        %2190 = vmatpush1.bf16.msra.mxu0 0
        %2191 = vmatprep.mubr.bf16.mxu0 0
        %2192 = vmatmul.mubr.bf16.gmra.mrb[0].mxu0 %v2154
        %v2193 = vpop.f32.mrb[0].mxu0
        %v2194 = vadd.f32 %v2106, %v2193
        %v2195 = vpop.f32.mrb[0].mxu0
        %v2196 = vpop.f32.mrb[0].mxu0
        %v2197 = vpop.f32.mrb[0].mxu0
        %2198 = vdwg.mxu0
        %v2199 = vmax.f32 %v2194, 0.0
        %v2200 = vpack.c.bf16 %v2199, %v2199
        %v2201 = vld [vmem:[%s13] sm:$0xf]
        %v2202 = vld [vmem:[%s13 + $0x4] sm:$0xf]
        %v2203 = vld [vmem:[%s13 + $0x8] sm:$0xf]
        %v2204 = vld [vmem:[%s13 + $0xc] sm:$0xf]
        %v2205 = vld [vmem:[%s13 + $0x10] sm:$0xf]
        %v2206 = vld [vmem:[%s13 + $0x14] sm:$0xf]
        %v2207 = vld [vmem:[%s13 + $0x18] sm:$0xf]
        %v2208 = vld [vmem:[%s13 + $0x1c] sm:$0xf]
        %v2209 = vld [vmem:[%s13 + $0x20] sm:$0xf]
        %v2210 = vld [vmem:[%s13 + $0x24] sm:$0xf]
        %v2211 = vld [vmem:[%s13 + $0x28] sm:$0x3]
        %v2212 = vld [vmem:[%s14] sm:$0x1]
        %v2224 = vunpack.c.l.b16 %v2201
        %v2225 = vunpack.c.l.b16 %v2202
        %v2226 = vunpack.c.l.b16 %v2203
        %v2227 = vunpack.c.l.b16 %v2204
        %v2228 = vunpack.c.l.b16 %v2205
        %v2229 = vunpack.c.l.b16 %v2206
        %v2230 = vunpack.c.l.b16 %v2207
        %v2231 = vunpack.c.l.b16 %v2208
        %v2232 = vunpack.c.l.b16 %v2209
        %v2233 = vunpack.c.l.b16 %v2210
        %v2234 = vunpack.c.l.b16 %v2211
        %v2235 = vpack.c.b16 %v2225, %v2224
        %v2236 = vpack.c.b16 %v2227, %v2226
        %v2237 = vpack.c.b16 %v2229, %v2228
        %v2238 = vpack.c.b16 %v2231, %v2230
        %v2239 = vpack.c.b16 %v2233, %v2232
        %v2240 = vpack.c.b16 %v2234, %v2234
        %v2247 = vsel %vm1111, %v2200, 0
        %v2250 = vsel %vm1461, %v2240, 0
        %2252 = vmatprep.subr.bf16.mxu0 0
        %2253 = vmatpush1.bf16.msra.mxu0 %v2235
        %2254 = vmatprep.subr.bf16.mxu0 0
        %2255 = vmatpush1.bf16.msra.mxu0 %v2236
        %2256 = vmatprep.subr.bf16.mxu0 0
        %2257 = vmatpush1.bf16.msra.mxu0 %v2237
        %2258 = vmatprep.subr.bf16.mxu0 0
        %2259 = vmatpush1.bf16.msra.mxu0 %v2238
        %2260 = vmatprep.subr.bf16.mxu0 0
        %2261 = vmatpush1.bf16.msra.mxu0 %v2239
        %2262 = vmatprep.subr.bf16.mxu0 0
        %2263 = vmatpush1.bf16.msra.mxu0 %v2250
        %2264 = vmatprep.subr.bf16.mxu0 0
        %2265 = vmatpush1.bf16.msra.mxu0 0
        %2266 = vmatprep.subr.bf16.mxu0 0
        %2267 = vmatpush1.bf16.msra.mxu0 0
        %2268 = vmatprep.subr.bf16.mxu0 0
        %2269 = vmatpush1.bf16.msra.mxu0 0
        %2270 = vmatprep.subr.bf16.mxu0 0
        %2271 = vmatpush1.bf16.msra.mxu0 0
        %2272 = vmatprep.subr.bf16.mxu0 0
        %2273 = vmatpush1.bf16.msra.mxu0 0
        %2274 = vmatprep.subr.bf16.mxu0 0
        %2275 = vmatpush1.bf16.msra.mxu0 0
        %2276 = vmatprep.subr.bf16.mxu0 0
        %2277 = vmatpush1.bf16.msra.mxu0 0
        %2278 = vmatprep.subr.bf16.mxu0 0
        %2279 = vmatpush1.bf16.msra.mxu0 0
        %2280 = vmatprep.subr.bf16.mxu0 0
        %2281 = vmatpush1.bf16.msra.mxu0 0
        %2282 = vmatprep.subr.bf16.mxu0 0
        %2283 = vmatpush1.bf16.msra.mxu0 0
        %2284 = vmatprep.mubr.bf16.mxu0 0
        %2285 = vmatmul.mubr.bf16.gmra.mrb[0].mxu0 %v2247
        %v2286 = vpop.f32.mrb[0].mxu0
        %v2287 = vadd.f32 %v2212, %v2286
        %v2288 = vpop.f32.mrb[0].mxu0
        %v2289 = vpop.f32.mrb[0].mxu0
        %v2290 = vpop.f32.mrb[0].mxu0
        %2291 = vdwg.mxu0
        %vm2292 = vcmask 73728
        %2293 = vst.msk [vmem:[%s486] sm:$0x1] %vm2292, %v2287
        %s2294 = sand.u32 %s357, 1
        %s2295 = scalar_lea.sflag [#allocation3], %s2294
        %s2296 = sand.u32 %s357, 1
        %s2297 = scalar_lea.vmem [#allocation2], %s2296
        // Predicated region
        $region81: #{dnn_v2_forward.1} parent=79 // pred_check
          %p2298 = pneg %p367
        $region82: #{dnn_v2_forward.1} parent=79 // pred_check_branch
          %2300 = sbr.rel (%p2298) target = $region84
        $region83: #{dnn_v2_forward.1} parent=79 // pred_region
          %s2302 = ssub.s32 16, 16
          %2303 = vsyncadd %s2295, %s2302
          %s2304 = smul.addr %s29, 16
          %s2305 = scalar_lea.hbm %s15, %s2304
          %s2307 = sshll.u32 %s2297, 4
          %s2308 = int_to_ptr.vmem [resolvable:$true] %s2307
          %2310 = dma.vmem_to_hbm [thread:$0]  %s2308, 16, %s2305, %s2295
        $region84: #{dnn_v2_forward.1} parent=79 // pred_fallthru
          _
      $region80: #{dnn_v2_forward.1} parent=5 // pred_fallthru
        _
      %p2311 = scmp.le.s32.totalorder 2, %s24
      // Predicated region
      $region85: #{dnn_v2_forward.1} parent=5 // pred_check
        %p2312 = pneg %p2311
      $region86: #{dnn_v2_forward.1} parent=5 // pred_check_branch
        %2314 = sbr.rel (%p2312) target = $region88
      $region87: #{dnn_v2_forward.1} parent=5 // pred_region
        %s2315 = ssub.s32 %s24, 2
        // Predicated region
        $region89: #{dnn_v2_forward.1} parent=87 // pred_check
          %p2316 = pneg %p373
        $region90: #{dnn_v2_forward.1} parent=87 // pred_check_branch
          %2318 = sbr.rel (%p2316) target = $region92
        $region91: #{dnn_v2_forward.1} parent=87 // pred_region
          %s2319 = sand.u32 %s358, 1
          %s2320 = scalar_lea.sflag [#allocation3], %s2319
          %s2321 = sand.u32 %s358, 1
          %s2322 = scalar_lea.vmem [#allocation2], %s2321
          %2323 = dma.done %s2320, 16
        $region92: #{dnn_v2_forward.1} parent=87 // pred_fallthru
          _
      $region88: #{dnn_v2_forward.1} parent=5 // pred_fallthru
        _
    $region6: #{dnn_v2_forward.1} parent=1 // loop_footer
      %s28 = sadd.s32 1, %s24
    $region7: #{dnn_v2_forward.1} parent=1 // loop_footer_branch
      %23 = sbr.rel target = $region3
    $region8: #{dnn_v2_forward.1} parent=1 // loop_exit
      _
    %2324 = vsyncpa [#allocation3], 1
    %s2325 = scalar_lea.sflag [#allocation3], 1
    %2326 = vsyncpa %s2325, 1

</llo_original>
